<compile_context>
chip_gen: v7x
topology: tpu7x:2x2x1
jax: 0.10.0
libtpu: 0.0.40
codegen_flags: <defaults>
</compile_context>

<pallas_src>
import functools
from dataclasses import dataclass

import jax
import jax.numpy as jnp
from jax import lax
from jax.experimental import pallas as pl
from jax.experimental.pallas import tpu as pltpu


HEAD_HIDDEN = 128  # fixed by the module spec: Linear(2H, 128)


@dataclass
class Config:
    INPUT_SIZE: int = 8
    HIDDEN_SIZE: int = 32
    NUM_LAYERS: int = 2
    OUTPUT_SIZE: int = 1


# ----------------------------------------------------------------------------
# Fused bidirectional recurrence (runs inside the kernel, fully unrolled).
# xp:  (T*B, 8H) f32 pre-computed input projection (+bias), interleaved gate
#      cols, with i/f/o columns pre-scaled by 0.5 (sigmoid-from-tanh trick).
# whh: (2H, 8H) bf16 block-structured recurrent weights (same 0.5 pre-scale).
# Returns python list of per-step combined hiddens steps[s] = [h_fw(s)|h_bw(T-1-s)].
# ----------------------------------------------------------------------------
def _run_bidir_layer(xp, whh, T, B, H):
    H2 = 2 * H
    h = jnp.zeros((B, H2), jnp.float32)
    c = jnp.zeros((B, H2), jnp.float32)
    steps = []
    for s in range(T):
        gates = xp[s * B:(s + 1) * B, :] + jnp.dot(
            h.astype(jnp.bfloat16), whh,
            preferred_element_type=jnp.float32)                   # (B, 8H) f32
        # ONE EUP tanh over the full gate vector; sigmoid gates recovered with
        # a VPU FMA since their pre-activations were pre-scaled by 0.5:
        #   sigmoid(z) = 0.5 * tanh(z/2) + 0.5
        t = jnp.tanh(gates)
        i_a = 0.5 * t[:, 0 * H2:1 * H2] + 0.5                     # [i_fw|i_bw]
        f_a = 0.5 * t[:, 1 * H2:2 * H2] + 0.5                     # [f_fw|f_bw]
        g_a = t[:, 2 * H2:3 * H2]                                 # [g_fw|g_bw]
        o_a = 0.5 * t[:, 3 * H2:4 * H2] + 0.5                     # [o_fw|o_bw]
        c = f_a * c + i_a * g_a
        h = o_a * jnp.tanh(c)
        steps.append(h)
    return steps


# ----------------------------------------------------------------------------
# Single fused kernel: all LSTM layers + both heads.
# refs = [x_pair, (wih, whh, b) * num_layers, wh1, bh1, wh2, bh2, out]
# ----------------------------------------------------------------------------
def _garch_fused_kernel(*refs, T, B, H, num_layers, out_dim):
    H2 = 2 * H
    n_in = 1 + 3 * num_layers + 4
    x_ref = refs[0]
    lstm_refs = refs[1:1 + 3 * num_layers]
    wh1_ref, bh1_ref, wh2_ref, bh2_ref = refs[n_in - 4:n_in]
    out_ref = refs[n_in]

    # paired input for layer 0: row block s = [x(s), x(T-1-s)]  (bf16)
    x_pair = x_ref[...]
    steps = None
    for L in range(num_layers):
        wih = lstm_refs[3 * L][...]                               # bf16
        whh = lstm_refs[3 * L + 1][...]                           # bf16
        bias = lstm_refs[3 * L + 2][...]                          # (1, 8H) f32

        # hoisted input projection for ALL timesteps, bias folded in
        xp = jnp.dot(x_pair, wih, preferred_element_type=jnp.float32) + bias
        steps = _run_bidir_layer(xp, whh, T, B, H)

        if L + 1 < num_layers:
            # Next layer's paired input built entirely in vregs:
            #   row block t = [steps[t], steps[T-1-t]]
            # The weight-row permutation that makes this layout correct was
            # applied host-side in pack_params (free).
            fwd_all = jnp.concatenate(steps, axis=0)              # (T*B, 2H)
            rev_all = jnp.concatenate(steps[::-1], axis=0)        # (T*B, 2H)
            x_pair = jnp.concatenate([fwd_all, rev_all],
                                     axis=1).astype(jnp.bfloat16)  # (T*B, 4H)

    # lstm_out[:, -1] == [h_fw(T-1), h_bw(T-1)]
    #   h_fw(T-1) = steps[T-1][:, 0:H],  h_bw(T-1) = steps[0][:, H:2H]
    feats = jnp.concatenate([steps[T - 1][:, 0:H], steps[0][:, H:H2]], axis=1)
    # Dropout(0.2) is identity in eval/inference mode.

    # fused heads (f32): one (B,2H)x(2H,256) matmul + one (B,256)x(256,2*OUT)
    hidden = jnp.maximum(
        jnp.dot(feats, wh1_ref[...], preferred_element_type=jnp.float32)
        + bh1_ref[...], 0.0)
    z = jnp.dot(hidden, wh2_ref[...], preferred_element_type=jnp.float32) + bh2_ref[...]
    # PyTorch Softplus(beta=1, threshold=20) on the variance half only;
    # single fused store of [mean | variance].
    sp = jnp.where(z > 20.0, z, jnp.log1p(jnp.exp(jnp.minimum(z, 20.0))))
    col = lax.broadcasted_iota(jnp.int32, z.shape, 1)
    out_ref[...] = jnp.where(col >= out_dim, sp, z)


# ----------------------------------------------------------------------------
# Parameter packing: PyTorch-shaped raw params -> kernel-ready combined weights.
# ----------------------------------------------------------------------------
def _interleave_gate_cols(w_fw_t, w_bw_t, H):
    """w_*_t: (in_dim, 4H) transposed weights, gate-contiguous cols [i,f,g,o].
    Returns (2*in_dim, 8H) with columns [i_fw,i_bw,f_fw,f_bw,g_fw,g_bw,o_fw,o_bw]
    and rows [fw inputs ; bw inputs] (block-diagonal per gate)."""
    d = w_fw_t.shape[0]
    z = jnp.zeros((d, H), jnp.float32)
    blocks = []
    for k in range(4):
        fw_k = w_fw_t[:, k * H:(k + 1) * H]
        bw_k = w_bw_t[:, k * H:(k + 1) * H]
        top = jnp.concatenate([fw_k, z], axis=1)
        bot = jnp.concatenate([z, bw_k], axis=1)
        blocks.append(jnp.concatenate([top, bot], axis=0))
    return jnp.concatenate(blocks, axis=1)


def _interleave_gate_bias(b_fw, b_bw, H):
    parts = []
    for k in range(4):
        parts.append(b_fw[k * H:(k + 1) * H])
        parts.append(b_bw[k * H:(k + 1) * H])
    return jnp.concatenate(parts).reshape(1, 8 * H)


def pack_params(raw, cfg):
    H = cfg.HIDDEN_SIZE
    H2 = 2 * H
    OUT = cfg.OUTPUT_SIZE

    # 0.5 pre-scale on i/f/o gate column blocks (sigmoid-from-tanh); g unscaled.
    gate_scale = jnp.concatenate([
        jnp.full((H2,), 0.5, jnp.float32),   # i
        jnp.full((H2,), 0.5, jnp.float32),   # f
        jnp.ones((H2,), jnp.float32),        # g
        jnp.full((H2,), 0.5, jnp.float32),   # o
    ])

    packed = {"lstm": []}
    for L, layer_p in enumerate(raw["lstm"]):
        fw, bw = layer_p["fw"], layer_p["bw"]
        wih = _interleave_gate_cols(fw["w_ih"].T, bw["w_ih"].T, H)
        whh = _interleave_gate_cols(fw["w_hh"].T, bw["w_hh"].T, H)
        b = _interleave_gate_bias(fw["b_ih"] + fw["b_hh"],
                                  bw["b_ih"] + bw["b_hh"], H)
        if L > 0:
            # Host-side row permutation so the kernel's layer-L input can be
            # concat([steps[t], steps[T-1-t]]) = [h_fw(t), h_bw(T-1-t),
            # h_fw(T-1-t), h_bw(t)].  Original row blocks (size H each):
            #   [fw.h_fw, fw.h_bw, bw.h_fw, bw.h_bw]  ->  [0, 3, 2, 1]
            wih = jnp.concatenate(
                [wih[0:H], wih[3 * H:4 * H], wih[2 * H:3 * H], wih[H:2 * H]],
                axis=0)
        # scale by exact power of two, then cast matmul operands to bf16
        wih = (wih * gate_scale).astype(jnp.bfloat16)
        whh = (whh * gate_scale).astype(jnp.bfloat16)
        b = (b * gate_scale).astype(jnp.float32)
        packed["lstm"] += [wih, whh, b]

    hd = raw["heads"]
    zc = jnp.zeros((HEAD_HIDDEN, OUT), jnp.float32)
    wh1 = jnp.concatenate([hd["w1m"].T, hd["w1v"].T], axis=1)           # (2H, 256)
    bh1 = jnp.concatenate([hd["b1m"], hd["b1v"]]).reshape(1, 2 * HEAD_HIDDEN)
    wh2 = jnp.concatenate(
        [jnp.concatenate([hd["w2m"].T, zc], axis=1),
         jnp.concatenate([zc, hd["w2v"].T], axis=1)], axis=0)           # (256, 2*OUT)
    bh2 = jnp.concatenate([hd["b2m"], hd["b2v"]]).reshape(1, 2 * OUT)
    packed["heads"] = [wh1, bh1, wh2, bh2]
    return packed


# ----------------------------------------------------------------------------
# Deterministic PyTorch-style raw parameter init.
# ----------------------------------------------------------------------------
def _uniform(key, shape, bound):
    return jax.random.uniform(key, shape, jnp.float32, -bound, bound)


def init_raw_params(key, cfg):
    H = cfg.HIDDEN_SIZE
    raw = {"lstm": []}
    k_lstm = 1.0 / float(H) ** 0.5
    for layer in range(cfg.NUM_LAYERS):
        d_in = cfg.INPUT_SIZE if layer == 0 else 2 * H
        layer_p = {}
        for dirname in ("fw", "bw"):
            key, k1, k2, k3, k4 = jax.random.split(key, 5)
            layer_p[dirname] = {
                "w_ih": _uniform(k1, (4 * H, d_in), k_lstm),
                "w_hh": _uniform(k2, (4 * H, H), k_lstm),
                "b_ih": _uniform(k3, (4 * H,), k_lstm),
                "b_hh": _uniform(k4, (4 * H,), k_lstm),
            }
        raw["lstm"].append(layer_p)

    feat = 2 * H
    k1 = 1.0 / float(feat) ** 0.5
    k2 = 1.0 / float(HEAD_HIDDEN) ** 0.5
    key, a1, a2, a3, a4, b1, b2, b3, b4 = jax.random.split(key, 9)
    raw["heads"] = {
        "w1m": _uniform(a1, (HEAD_HIDDEN, feat), k1),
        "b1m": _uniform(a2, (HEAD_HIDDEN,), k1),
        "w2m": _uniform(a3, (cfg.OUTPUT_SIZE, HEAD_HIDDEN), k2),
        "b2m": _uniform(a4, (cfg.OUTPUT_SIZE,), k2),
        "w1v": _uniform(b1, (HEAD_HIDDEN, feat), k1),
        "b1v": _uniform(b2, (HEAD_HIDDEN,), k1),
        "w2v": _uniform(b3, (cfg.OUTPUT_SIZE, HEAD_HIDDEN), k2),
        "b2v": _uniform(b4, (cfg.OUTPUT_SIZE,), k2),
    }
    return raw


# ----------------------------------------------------------------------------
# Forward pass wrapper: one pallas_call for the whole model.
# ----------------------------------------------------------------------------
def forward(packed, x, cfg):
    B, T, D = x.shape
    H = cfg.HIDDEN_SIZE
    OUT = cfg.OUTPUT_SIZE

    # Build paired time-major input once: row block s = [x(s), x(T-1-s)].
    x_tm = jnp.transpose(x, (1, 0, 2)).astype(jnp.float32)          # (T, B, D)
    x_pair = jnp.concatenate([x_tm, x_tm[::-1]], axis=-1)
    x_pair = x_pair.reshape(T * B, 2 * D).astype(jnp.bfloat16)

    args = [x_pair] + list(packed["lstm"]) + list(packed["heads"])
    kernel = functools.partial(_garch_fused_kernel, T=T, B=B, H=H,
                               num_layers=cfg.NUM_LAYERS, out_dim=OUT)
    vmem = pl.BlockSpec(memory_space=pltpu.MemorySpace.VMEM)
    # Single ungridded call; everything (<1 MiB) is VMEM resident, fully
    # unrolled T=8.  For large batches on v7x, add a batch grid axis with
    # dimension_semantics=("parallel",) to use both TensorCores.
    fused = pl.pallas_call(
        kernel,
        out_shape=jax.ShapeDtypeStruct((B, 2 * OUT), jnp.float32),
        in_specs=[vmem] * len(args),
        out_specs=vmem,
    )(*args)
    return fused[:, :OUT], fused[:, OUT:2 * OUT]


# ----------------------------------------------------------------------------
# Pure-JAX reference (straight port of the PyTorch module) for validation.
# ----------------------------------------------------------------------------
def reference_forward(raw, x, cfg):
    H = cfg.HIDDEN_SIZE
    hi = jax.lax.Precision.HIGHEST

    def lstm_dir(x_tm, w_ih, w_hh, b_ih, b_hh):
        B_ = x_tm.shape[1]

        def step(carry, x_t):
            h, c = carry
            g = (jnp.dot(x_t, w_ih.T, precision=hi)
                 + jnp.dot(h, w_hh.T, precision=hi) + b_ih + b_hh)
            i = jax.nn.sigmoid(g[:, 0:H])
            f = jax.nn.sigmoid(g[:, H:2 * H])
            gg = jnp.tanh(g[:, 2 * H:3 * H])
            o = jax.nn.sigmoid(g[:, 3 * H:4 * H])
            c = f * c + i * gg
            h = o * jnp.tanh(c)
            return (h, c), h

        init = (jnp.zeros((B_, H), jnp.float32), jnp.zeros((B_, H), jnp.float32))
        _, hs = lax.scan(step, init, x_tm)
        return hs

    layer_in = jnp.transpose(x, (1, 0, 2)).astype(jnp.float32)
    for L in range(cfg.NUM_LAYERS):
        p = raw["lstm"][L]
        hf = lstm_dir(layer_in, p["fw"]["w_ih"], p["fw"]["w_hh"],
                      p["fw"]["b_ih"], p["fw"]["b_hh"])
        hb = lstm_dir(layer_in[::-1], p["bw"]["w_ih"], p["bw"]["w_hh"],
                      p["bw"]["b_ih"], p["bw"]["b_hh"])[::-1]
        layer_in = jnp.concatenate([hf, hb], axis=-1)

    feats = layer_in[-1]
    hd = raw["heads"]
    hm = jax.nn.relu(jnp.dot(feats, hd["w1m"].T, precision=hi) + hd["b1m"])
    mean = jnp.dot(hm, hd["w2m"].T, precision=hi) + hd["b2m"]
    hv = jax.nn.relu(jnp.dot(feats, hd["w1v"].T, precision=hi) + hd["b1v"])
    zv = jnp.dot(hv, hd["w2v"].T, precision=hi) + hd["b2v"]
    var = jnp.where(zv > 20.0, zv, jnp.log1p(jnp.exp(jnp.minimum(zv, 20.0))))
    return mean, var


if __name__ == "__main__":
    cfg = Config(INPUT_SIZE=8, HIDDEN_SIZE=32, NUM_LAYERS=2, OUTPUT_SIZE=1)
    key = jax.random.PRNGKey(0)
    k_param, k_x = jax.random.split(key)

    raw = init_raw_params(k_param, cfg)
    packed = pack_params(raw, cfg)

    B, T = 2, 8
    x = jax.random.normal(k_x, (B, T, cfg.INPUT_SIZE), jnp.float32)

    fwd = jax.jit(lambda p, xx: forward(p, xx, cfg))
    mean, variance = fwd(packed, x)
    jax.block_until_ready((mean, variance))

    assert mean.shape == (B, cfg.OUTPUT_SIZE)
    assert variance.shape == (B, cfg.OUTPUT_SIZE)
    assert bool(jnp.all(variance > 0.0))        # softplus output is positive

    # Validate against the pure-JAX f32 reference.  Tolerance accounts for
    # bf16 matmul-operand rounding compounded over the 16 serial recurrence
    # matmuls (accumulation stays f32); a layout/gate-order bug would produce
    # O(0.1) errors and still be caught.
    ref_mean, ref_var = jax.jit(lambda r, xx: reference_forward(r, xx, cfg))(raw, x)
    jax.block_until_ready((ref_mean, ref_var))
    assert bool(jnp.allclose(mean, ref_mean, atol=5e-3, rtol=5e-3)), (mean, ref_mean)
    assert bool(jnp.allclose(variance, ref_var, atol=5e-3, rtol=5e-3)), (variance, ref_var)

    print("KERNEL_OK")
</pallas_src>

<mosaic_0001>
module attributes {stable_mosaic.version = 11 : i64} {
  func.func @_garch_fused_kernel(%arg0: memref<16x16xbf16, #tpu.memory_space<vmem>>, %arg1: memref<16x256xbf16, #tpu.memory_space<vmem>>, %arg2: memref<64x256xbf16, #tpu.memory_space<vmem>>, %arg3: memref<1x256xf32, #tpu.memory_space<vmem>>, %arg4: memref<128x256xbf16, #tpu.memory_space<vmem>>, %arg5: memref<64x256xbf16, #tpu.memory_space<vmem>>, %arg6: memref<1x256xf32, #tpu.memory_space<vmem>>, %arg7: memref<64x256xf32, #tpu.memory_space<vmem>>, %arg8: memref<1x256xf32, #tpu.memory_space<vmem>>, %arg9: memref<256x2xf32, #tpu.memory_space<vmem>>, %arg10: memref<1x2xf32, #tpu.memory_space<vmem>>, %arg11: memref<2x2xf32, #tpu.memory_space<vmem>>) attributes {dimension_semantics = [], scalar_prefetch = 0 : i64, scratch_operands = 0 : i64, tpu.core_type = #tpu.core_type<tc>} {
    %c0 = arith.constant 0 : index
    %c0_0 = arith.constant 0 : index
    %0 = vector.load %arg0[%c0, %c0_0] : memref<16x16xbf16, #tpu.memory_space<vmem>>, vector<16x16xbf16>
    %c0_1 = arith.constant 0 : index
    %c0_2 = arith.constant 0 : index
    %1 = vector.load %arg1[%c0_1, %c0_2] : memref<16x256xbf16, #tpu.memory_space<vmem>>, vector<16x256xbf16>
    %c0_3 = arith.constant 0 : index
    %c0_4 = arith.constant 0 : index
    %2 = vector.load %arg2[%c0_3, %c0_4] : memref<64x256xbf16, #tpu.memory_space<vmem>>, vector<64x256xbf16>
    %c0_5 = arith.constant 0 : index
    %c0_6 = arith.constant 0 : index
    %3 = vector.load %arg3[%c0_5, %c0_6] : memref<1x256xf32, #tpu.memory_space<vmem>>, vector<1x256xf32>
    %cst = arith.constant dense<0.000000e+00> : vector<16x256xf32>
    %4 = tpu.matmul %0, %1, %cst {dimension_numbers = #tpu.dot_dimension_numbers<[1], [0], [0], [1], [0, 0, 1, 1], [], []>} : vector<16x16xbf16>, vector<16x256xbf16>, vector<16x256xf32> -> vector<16x256xf32>
    %5 = vector.broadcast %3 : vector<1x256xf32> to vector<16x256xf32>
    %6 = arith.addf %4, %5 : vector<16x256xf32>
    %cst_7 = arith.constant 0.000000e+00 : f32
    %7 = vector.broadcast %cst_7 : f32 to vector<2x64xf32>
    %cst_8 = arith.constant 0.000000e+00 : f32
    %8 = vector.broadcast %cst_8 : f32 to vector<2x64xf32>
    %9 = vector.extract_strided_slice %6 {offsets = [0, 0], sizes = [2, 256], strides = [1, 1]} : vector<16x256xf32> to vector<2x256xf32>
    %10 = arith.truncf %7 : vector<2x64xf32> to vector<2x64xbf16>
    %cst_9 = arith.constant dense<0.000000e+00> : vector<2x256xf32>
    %11 = tpu.matmul %10, %2, %cst_9 {dimension_numbers = #tpu.dot_dimension_numbers<[1], [0], [0], [1], [0, 0, 1, 1], [], []>} : vector<2x64xbf16>, vector<64x256xbf16>, vector<2x256xf32> -> vector<2x256xf32>
    %12 = arith.addf %9, %11 : vector<2x256xf32>
    %13 = math.tanh %12 : vector<2x256xf32>
    %14 = vector.extract_strided_slice %13 {offsets = [0, 0], sizes = [2, 64], strides = [1, 1]} : vector<2x256xf32> to vector<2x64xf32>
    %cst_10 = arith.constant 5.000000e-01 : f32
    %15 = vector.broadcast %cst_10 : f32 to vector<2x64xf32>
    %16 = arith.mulf %15, %14 : vector<2x64xf32>
    %cst_11 = arith.constant 5.000000e-01 : f32
    %17 = vector.broadcast %cst_11 : f32 to vector<2x64xf32>
    %18 = arith.addf %16, %17 : vector<2x64xf32>
    %19 = vector.extract_strided_slice %13 {offsets = [0, 64], sizes = [2, 64], strides = [1, 1]} : vector<2x256xf32> to vector<2x64xf32>
    %cst_12 = arith.constant 5.000000e-01 : f32
    %20 = vector.broadcast %cst_12 : f32 to vector<2x64xf32>
    %21 = arith.mulf %20, %19 : vector<2x64xf32>
    %cst_13 = arith.constant 5.000000e-01 : f32
    %22 = vector.broadcast %cst_13 : f32 to vector<2x64xf32>
    %23 = arith.addf %21, %22 : vector<2x64xf32>
    %24 = vector.extract_strided_slice %13 {offsets = [0, 128], sizes = [2, 64], strides = [1, 1]} : vector<2x256xf32> to vector<2x64xf32>
    %25 = vector.extract_strided_slice %13 {offsets = [0, 192], sizes = [2, 64], strides = [1, 1]} : vector<2x256xf32> to vector<2x64xf32>
    %cst_14 = arith.constant 5.000000e-01 : f32
    %26 = vector.broadcast %cst_14 : f32 to vector<2x64xf32>
    %27 = arith.mulf %26, %25 : vector<2x64xf32>
    %cst_15 = arith.constant 5.000000e-01 : f32
    %28 = vector.broadcast %cst_15 : f32 to vector<2x64xf32>
    %29 = arith.addf %27, %28 : vector<2x64xf32>
    %30 = arith.mulf %23, %8 : vector<2x64xf32>
    %31 = arith.mulf %18, %24 : vector<2x64xf32>
    %32 = arith.addf %30, %31 : vector<2x64xf32>
    %33 = math.tanh %32 : vector<2x64xf32>
    %34 = arith.mulf %29, %33 : vector<2x64xf32>
    %35 = vector.extract_strided_slice %6 {offsets = [2, 0], sizes = [2, 256], strides = [1, 1]} : vector<16x256xf32> to vector<2x256xf32>
    %36 = arith.truncf %34 : vector<2x64xf32> to vector<2x64xbf16>
    %cst_16 = arith.constant dense<0.000000e+00> : vector<2x256xf32>
    %37 = tpu.matmul %36, %2, %cst_16 {dimension_numbers = #tpu.dot_dimension_numbers<[1], [0], [0], [1], [0, 0, 1, 1], [], []>} : vector<2x64xbf16>, vector<64x256xbf16>, vector<2x256xf32> -> vector<2x256xf32>
    %38 = arith.addf %35, %37 : vector<2x256xf32>
    %39 = math.tanh %38 : vector<2x256xf32>
    %40 = vector.extract_strided_slice %39 {offsets = [0, 0], sizes = [2, 64], strides = [1, 1]} : vector<2x256xf32> to vector<2x64xf32>
    %cst_17 = arith.constant 5.000000e-01 : f32
    %41 = vector.broadcast %cst_17 : f32 to vector<2x64xf32>
    %42 = arith.mulf %41, %40 : vector<2x64xf32>
    %cst_18 = arith.constant 5.000000e-01 : f32
    %43 = vector.broadcast %cst_18 : f32 to vector<2x64xf32>
    %44 = arith.addf %42, %43 : vector<2x64xf32>
    %45 = vector.extract_strided_slice %39 {offsets = [0, 64], sizes = [2, 64], strides = [1, 1]} : vector<2x256xf32> to vector<2x64xf32>
    %cst_19 = arith.constant 5.000000e-01 : f32
    %46 = vector.broadcast %cst_19 : f32 to vector<2x64xf32>
    %47 = arith.mulf %46, %45 : vector<2x64xf32>
    %cst_20 = arith.constant 5.000000e-01 : f32
    %48 = vector.broadcast %cst_20 : f32 to vector<2x64xf32>
    %49 = arith.addf %47, %48 : vector<2x64xf32>
    %50 = vector.extract_strided_slice %39 {offsets = [0, 128], sizes = [2, 64], strides = [1, 1]} : vector<2x256xf32> to vector<2x64xf32>
    %51 = vector.extract_strided_slice %39 {offsets = [0, 192], sizes = [2, 64], strides = [1, 1]} : vector<2x256xf32> to vector<2x64xf32>
    %cst_21 = arith.constant 5.000000e-01 : f32
    %52 = vector.broadcast %cst_21 : f32 to vector<2x64xf32>
    %53 = arith.mulf %52, %51 : vector<2x64xf32>
    %cst_22 = arith.constant 5.000000e-01 : f32
    %54 = vector.broadcast %cst_22 : f32 to vector<2x64xf32>
    %55 = arith.addf %53, %54 : vector<2x64xf32>
    %56 = arith.mulf %49, %32 : vector<2x64xf32>
    %57 = arith.mulf %44, %50 : vector<2x64xf32>
    %58 = arith.addf %56, %57 : vector<2x64xf32>
    %59 = math.tanh %58 : vector<2x64xf32>
    %60 = arith.mulf %55, %59 : vector<2x64xf32>
    %61 = vector.extract_strided_slice %6 {offsets = [4, 0], sizes = [2, 256], strides = [1, 1]} : vector<16x256xf32> to vector<2x256xf32>
    %62 = arith.truncf %60 : vector<2x64xf32> to vector<2x64xbf16>
    %cst_23 = arith.constant dense<0.000000e+00> : vector<2x256xf32>
    %63 = tpu.matmul %62, %2, %cst_23 {dimension_numbers = #tpu.dot_dimension_numbers<[1], [0], [0], [1], [0, 0, 1, 1], [], []>} : vector<2x64xbf16>, vector<64x256xbf16>, vector<2x256xf32> -> vector<2x256xf32>
    %64 = arith.addf %61, %63 : vector<2x256xf32>
    %65 = math.tanh %64 : vector<2x256xf32>
    %66 = vector.extract_strided_slice %65 {offsets = [0, 0], sizes = [2, 64], strides = [1, 1]} : vector<2x256xf32> to vector<2x64xf32>
    %cst_24 = arith.constant 5.000000e-01 : f32
    %67 = vector.broadcast %cst_24 : f32 to vector<2x64xf32>
    %68 = arith.mulf %67, %66 : vector<2x64xf32>
    %cst_25 = arith.constant 5.000000e-01 : f32
    %69 = vector.broadcast %cst_25 : f32 to vector<2x64xf32>
    %70 = arith.addf %68, %69 : vector<2x64xf32>
    %71 = vector.extract_strided_slice %65 {offsets = [0, 64], sizes = [2, 64], strides = [1, 1]} : vector<2x256xf32> to vector<2x64xf32>
    %cst_26 = arith.constant 5.000000e-01 : f32
    %72 = vector.broadcast %cst_26 : f32 to vector<2x64xf32>
    %73 = arith.mulf %72, %71 : vector<2x64xf32>
    %cst_27 = arith.constant 5.000000e-01 : f32
    %74 = vector.broadcast %cst_27 : f32 to vector<2x64xf32>
    %75 = arith.addf %73, %74 : vector<2x64xf32>
    %76 = vector.extract_strided_slice %65 {offsets = [0, 128], sizes = [2, 64], strides = [1, 1]} : vector<2x256xf32> to vector<2x64xf32>
    %77 = vector.extract_strided_slice %65 {offsets = [0, 192], sizes = [2, 64], strides = [1, 1]} : vector<2x256xf32> to vector<2x64xf32>
    %cst_28 = arith.constant 5.000000e-01 : f32
    %78 = vector.broadcast %cst_28 : f32 to vector<2x64xf32>
    %79 = arith.mulf %78, %77 : vector<2x64xf32>
    %cst_29 = arith.constant 5.000000e-01 : f32
    %80 = vector.broadcast %cst_29 : f32 to vector<2x64xf32>
    %81 = arith.addf %79, %80 : vector<2x64xf32>
    %82 = arith.mulf %75, %58 : vector<2x64xf32>
    %83 = arith.mulf %70, %76 : vector<2x64xf32>
    %84 = arith.addf %82, %83 : vector<2x64xf32>
    %85 = math.tanh %84 : vector<2x64xf32>
    %86 = arith.mulf %81, %85 : vector<2x64xf32>
    %87 = vector.extract_strided_slice %6 {offsets = [6, 0], sizes = [2, 256], strides = [1, 1]} : vector<16x256xf32> to vector<2x256xf32>
    %88 = arith.truncf %86 : vector<2x64xf32> to vector<2x64xbf16>
    %cst_30 = arith.constant dense<0.000000e+00> : vector<2x256xf32>
    %89 = tpu.matmul %88, %2, %cst_30 {dimension_numbers = #tpu.dot_dimension_numbers<[1], [0], [0], [1], [0, 0, 1, 1], [], []>} : vector<2x64xbf16>, vector<64x256xbf16>, vector<2x256xf32> -> vector<2x256xf32>
    %90 = arith.addf %87, %89 : vector<2x256xf32>
    %91 = math.tanh %90 : vector<2x256xf32>
    %92 = vector.extract_strided_slice %91 {offsets = [0, 0], sizes = [2, 64], strides = [1, 1]} : vector<2x256xf32> to vector<2x64xf32>
    %cst_31 = arith.constant 5.000000e-01 : f32
    %93 = vector.broadcast %cst_31 : f32 to vector<2x64xf32>
    %94 = arith.mulf %93, %92 : vector<2x64xf32>
    %cst_32 = arith.constant 5.000000e-01 : f32
    %95 = vector.broadcast %cst_32 : f32 to vector<2x64xf32>
    %96 = arith.addf %94, %95 : vector<2x64xf32>
    %97 = vector.extract_strided_slice %91 {offsets = [0, 64], sizes = [2, 64], strides = [1, 1]} : vector<2x256xf32> to vector<2x64xf32>
    %cst_33 = arith.constant 5.000000e-01 : f32
    %98 = vector.broadcast %cst_33 : f32 to vector<2x64xf32>
    %99 = arith.mulf %98, %97 : vector<2x64xf32>
    %cst_34 = arith.constant 5.000000e-01 : f32
    %100 = vector.broadcast %cst_34 : f32 to vector<2x64xf32>
    %101 = arith.addf %99, %100 : vector<2x64xf32>
    %102 = vector.extract_strided_slice %91 {offsets = [0, 128], sizes = [2, 64], strides = [1, 1]} : vector<2x256xf32> to vector<2x64xf32>
    %103 = vector.extract_strided_slice %91 {offsets = [0, 192], sizes = [2, 64], strides = [1, 1]} : vector<2x256xf32> to vector<2x64xf32>
    %cst_35 = arith.constant 5.000000e-01 : f32
    %104 = vector.broadcast %cst_35 : f32 to vector<2x64xf32>
    %105 = arith.mulf %104, %103 : vector<2x64xf32>
    %cst_36 = arith.constant 5.000000e-01 : f32
    %106 = vector.broadcast %cst_36 : f32 to vector<2x64xf32>
    %107 = arith.addf %105, %106 : vector<2x64xf32>
    %108 = arith.mulf %101, %84 : vector<2x64xf32>
    %109 = arith.mulf %96, %102 : vector<2x64xf32>
    %110 = arith.addf %108, %109 : vector<2x64xf32>
    %111 = math.tanh %110 : vector<2x64xf32>
    %112 = arith.mulf %107, %111 : vector<2x64xf32>
    %113 = vector.extract_strided_slice %6 {offsets = [8, 0], sizes = [2, 256], strides = [1, 1]} : vector<16x256xf32> to vector<2x256xf32>
    %114 = arith.truncf %112 : vector<2x64xf32> to vector<2x64xbf16>
    %cst_37 = arith.constant dense<0.000000e+00> : vector<2x256xf32>
    %115 = tpu.matmul %114, %2, %cst_37 {dimension_numbers = #tpu.dot_dimension_numbers<[1], [0], [0], [1], [0, 0, 1, 1], [], []>} : vector<2x64xbf16>, vector<64x256xbf16>, vector<2x256xf32> -> vector<2x256xf32>
    %116 = arith.addf %113, %115 : vector<2x256xf32>
    %117 = math.tanh %116 : vector<2x256xf32>
    %118 = vector.extract_strided_slice %117 {offsets = [0, 0], sizes = [2, 64], strides = [1, 1]} : vector<2x256xf32> to vector<2x64xf32>
    %cst_38 = arith.constant 5.000000e-01 : f32
    %119 = vector.broadcast %cst_38 : f32 to vector<2x64xf32>
    %120 = arith.mulf %119, %118 : vector<2x64xf32>
    %cst_39 = arith.constant 5.000000e-01 : f32
    %121 = vector.broadcast %cst_39 : f32 to vector<2x64xf32>
    %122 = arith.addf %120, %121 : vector<2x64xf32>
    %123 = vector.extract_strided_slice %117 {offsets = [0, 64], sizes = [2, 64], strides = [1, 1]} : vector<2x256xf32> to vector<2x64xf32>
    %cst_40 = arith.constant 5.000000e-01 : f32
    %124 = vector.broadcast %cst_40 : f32 to vector<2x64xf32>
    %125 = arith.mulf %124, %123 : vector<2x64xf32>
    %cst_41 = arith.constant 5.000000e-01 : f32
    %126 = vector.broadcast %cst_41 : f32 to vector<2x64xf32>
    %127 = arith.addf %125, %126 : vector<2x64xf32>
    %128 = vector.extract_strided_slice %117 {offsets = [0, 128], sizes = [2, 64], strides = [1, 1]} : vector<2x256xf32> to vector<2x64xf32>
    %129 = vector.extract_strided_slice %117 {offsets = [0, 192], sizes = [2, 64], strides = [1, 1]} : vector<2x256xf32> to vector<2x64xf32>
    %cst_42 = arith.constant 5.000000e-01 : f32
    %130 = vector.broadcast %cst_42 : f32 to vector<2x64xf32>
    %131 = arith.mulf %130, %129 : vector<2x64xf32>
    %cst_43 = arith.constant 5.000000e-01 : f32
    %132 = vector.broadcast %cst_43 : f32 to vector<2x64xf32>
    %133 = arith.addf %131, %132 : vector<2x64xf32>
    %134 = arith.mulf %127, %110 : vector<2x64xf32>
    %135 = arith.mulf %122, %128 : vector<2x64xf32>
    %136 = arith.addf %134, %135 : vector<2x64xf32>
    %137 = math.tanh %136 : vector<2x64xf32>
    %138 = arith.mulf %133, %137 : vector<2x64xf32>
    %139 = vector.extract_strided_slice %6 {offsets = [10, 0], sizes = [2, 256], strides = [1, 1]} : vector<16x256xf32> to vector<2x256xf32>
    %140 = arith.truncf %138 : vector<2x64xf32> to vector<2x64xbf16>
    %cst_44 = arith.constant dense<0.000000e+00> : vector<2x256xf32>
    %141 = tpu.matmul %140, %2, %cst_44 {dimension_numbers = #tpu.dot_dimension_numbers<[1], [0], [0], [1], [0, 0, 1, 1], [], []>} : vector<2x64xbf16>, vector<64x256xbf16>, vector<2x256xf32> -> vector<2x256xf32>
    %142 = arith.addf %139, %141 : vector<2x256xf32>
    %143 = math.tanh %142 : vector<2x256xf32>
    %144 = vector.extract_strided_slice %143 {offsets = [0, 0], sizes = [2, 64], strides = [1, 1]} : vector<2x256xf32> to vector<2x64xf32>
    %cst_45 = arith.constant 5.000000e-01 : f32
    %145 = vector.broadcast %cst_45 : f32 to vector<2x64xf32>
    %146 = arith.mulf %145, %144 : vector<2x64xf32>
    %cst_46 = arith.constant 5.000000e-01 : f32
    %147 = vector.broadcast %cst_46 : f32 to vector<2x64xf32>
    %148 = arith.addf %146, %147 : vector<2x64xf32>
    %149 = vector.extract_strided_slice %143 {offsets = [0, 64], sizes = [2, 64], strides = [1, 1]} : vector<2x256xf32> to vector<2x64xf32>
    %cst_47 = arith.constant 5.000000e-01 : f32
    %150 = vector.broadcast %cst_47 : f32 to vector<2x64xf32>
    %151 = arith.mulf %150, %149 : vector<2x64xf32>
    %cst_48 = arith.constant 5.000000e-01 : f32
    %152 = vector.broadcast %cst_48 : f32 to vector<2x64xf32>
    %153 = arith.addf %151, %152 : vector<2x64xf32>
    %154 = vector.extract_strided_slice %143 {offsets = [0, 128], sizes = [2, 64], strides = [1, 1]} : vector<2x256xf32> to vector<2x64xf32>
    %155 = vector.extract_strided_slice %143 {offsets = [0, 192], sizes = [2, 64], strides = [1, 1]} : vector<2x256xf32> to vector<2x64xf32>
    %cst_49 = arith.constant 5.000000e-01 : f32
    %156 = vector.broadcast %cst_49 : f32 to vector<2x64xf32>
    %157 = arith.mulf %156, %155 : vector<2x64xf32>
    %cst_50 = arith.constant 5.000000e-01 : f32
    %158 = vector.broadcast %cst_50 : f32 to vector<2x64xf32>
    %159 = arith.addf %157, %158 : vector<2x64xf32>
    %160 = arith.mulf %153, %136 : vector<2x64xf32>
    %161 = arith.mulf %148, %154 : vector<2x64xf32>
    %162 = arith.addf %160, %161 : vector<2x64xf32>
    %163 = math.tanh %162 : vector<2x64xf32>
    %164 = arith.mulf %159, %163 : vector<2x64xf32>
    %165 = vector.extract_strided_slice %6 {offsets = [12, 0], sizes = [2, 256], strides = [1, 1]} : vector<16x256xf32> to vector<2x256xf32>
    %166 = arith.truncf %164 : vector<2x64xf32> to vector<2x64xbf16>
    %cst_51 = arith.constant dense<0.000000e+00> : vector<2x256xf32>
    %167 = tpu.matmul %166, %2, %cst_51 {dimension_numbers = #tpu.dot_dimension_numbers<[1], [0], [0], [1], [0, 0, 1, 1], [], []>} : vector<2x64xbf16>, vector<64x256xbf16>, vector<2x256xf32> -> vector<2x256xf32>
    %168 = arith.addf %165, %167 : vector<2x256xf32>
    %169 = math.tanh %168 : vector<2x256xf32>
    %170 = vector.extract_strided_slice %169 {offsets = [0, 0], sizes = [2, 64], strides = [1, 1]} : vector<2x256xf32> to vector<2x64xf32>
    %cst_52 = arith.constant 5.000000e-01 : f32
    %171 = vector.broadcast %cst_52 : f32 to vector<2x64xf32>
    %172 = arith.mulf %171, %170 : vector<2x64xf32>
    %cst_53 = arith.constant 5.000000e-01 : f32
    %173 = vector.broadcast %cst_53 : f32 to vector<2x64xf32>
    %174 = arith.addf %172, %173 : vector<2x64xf32>
    %175 = vector.extract_strided_slice %169 {offsets = [0, 64], sizes = [2, 64], strides = [1, 1]} : vector<2x256xf32> to vector<2x64xf32>
    %cst_54 = arith.constant 5.000000e-01 : f32
    %176 = vector.broadcast %cst_54 : f32 to vector<2x64xf32>
    %177 = arith.mulf %176, %175 : vector<2x64xf32>
    %cst_55 = arith.constant 5.000000e-01 : f32
    %178 = vector.broadcast %cst_55 : f32 to vector<2x64xf32>
    %179 = arith.addf %177, %178 : vector<2x64xf32>
    %180 = vector.extract_strided_slice %169 {offsets = [0, 128], sizes = [2, 64], strides = [1, 1]} : vector<2x256xf32> to vector<2x64xf32>
    %181 = vector.extract_strided_slice %169 {offsets = [0, 192], sizes = [2, 64], strides = [1, 1]} : vector<2x256xf32> to vector<2x64xf32>
    %cst_56 = arith.constant 5.000000e-01 : f32
    %182 = vector.broadcast %cst_56 : f32 to vector<2x64xf32>
    %183 = arith.mulf %182, %181 : vector<2x64xf32>
    %cst_57 = arith.constant 5.000000e-01 : f32
    %184 = vector.broadcast %cst_57 : f32 to vector<2x64xf32>
    %185 = arith.addf %183, %184 : vector<2x64xf32>
    %186 = arith.mulf %179, %162 : vector<2x64xf32>
    %187 = arith.mulf %174, %180 : vector<2x64xf32>
    %188 = arith.addf %186, %187 : vector<2x64xf32>
    %189 = math.tanh %188 : vector<2x64xf32>
    %190 = arith.mulf %185, %189 : vector<2x64xf32>
    %191 = vector.extract_strided_slice %6 {offsets = [14, 0], sizes = [2, 256], strides = [1, 1]} : vector<16x256xf32> to vector<2x256xf32>
    %192 = arith.truncf %190 : vector<2x64xf32> to vector<2x64xbf16>
    %cst_58 = arith.constant dense<0.000000e+00> : vector<2x256xf32>
    %193 = tpu.matmul %192, %2, %cst_58 {dimension_numbers = #tpu.dot_dimension_numbers<[1], [0], [0], [1], [0, 0, 1, 1], [], []>} : vector<2x64xbf16>, vector<64x256xbf16>, vector<2x256xf32> -> vector<2x256xf32>
    %194 = arith.addf %191, %193 : vector<2x256xf32>
    %195 = math.tanh %194 : vector<2x256xf32>
    %196 = vector.extract_strided_slice %195 {offsets = [0, 0], sizes = [2, 64], strides = [1, 1]} : vector<2x256xf32> to vector<2x64xf32>
    %cst_59 = arith.constant 5.000000e-01 : f32
    %197 = vector.broadcast %cst_59 : f32 to vector<2x64xf32>
    %198 = arith.mulf %197, %196 : vector<2x64xf32>
    %cst_60 = arith.constant 5.000000e-01 : f32
    %199 = vector.broadcast %cst_60 : f32 to vector<2x64xf32>
    %200 = arith.addf %198, %199 : vector<2x64xf32>
    %201 = vector.extract_strided_slice %195 {offsets = [0, 64], sizes = [2, 64], strides = [1, 1]} : vector<2x256xf32> to vector<2x64xf32>
    %cst_61 = arith.constant 5.000000e-01 : f32
    %202 = vector.broadcast %cst_61 : f32 to vector<2x64xf32>
    %203 = arith.mulf %202, %201 : vector<2x64xf32>
    %cst_62 = arith.constant 5.000000e-01 : f32
    %204 = vector.broadcast %cst_62 : f32 to vector<2x64xf32>
    %205 = arith.addf %203, %204 : vector<2x64xf32>
    %206 = vector.extract_strided_slice %195 {offsets = [0, 128], sizes = [2, 64], strides = [1, 1]} : vector<2x256xf32> to vector<2x64xf32>
    %207 = vector.extract_strided_slice %195 {offsets = [0, 192], sizes = [2, 64], strides = [1, 1]} : vector<2x256xf32> to vector<2x64xf32>
    %cst_63 = arith.constant 5.000000e-01 : f32
    %208 = vector.broadcast %cst_63 : f32 to vector<2x64xf32>
    %209 = arith.mulf %208, %207 : vector<2x64xf32>
    %cst_64 = arith.constant 5.000000e-01 : f32
    %210 = vector.broadcast %cst_64 : f32 to vector<2x64xf32>
    %211 = arith.addf %209, %210 : vector<2x64xf32>
    %212 = arith.mulf %205, %188 : vector<2x64xf32>
    %213 = arith.mulf %200, %206 : vector<2x64xf32>
    %214 = arith.addf %212, %213 : vector<2x64xf32>
    %215 = math.tanh %214 : vector<2x64xf32>
    %216 = arith.mulf %211, %215 : vector<2x64xf32>
    %217 = tpu.concatenate %34, %60, %86, %112, %138, %164, %190, %216 in 0 : vector<2x64xf32>, vector<2x64xf32>, vector<2x64xf32>, vector<2x64xf32>, vector<2x64xf32>, vector<2x64xf32>, vector<2x64xf32>, vector<2x64xf32> -> vector<16x64xf32>
    %218 = tpu.concatenate %216, %190, %164, %138, %112, %86, %60, %34 in 0 : vector<2x64xf32>, vector<2x64xf32>, vector<2x64xf32>, vector<2x64xf32>, vector<2x64xf32>, vector<2x64xf32>, vector<2x64xf32>, vector<2x64xf32> -> vector<16x64xf32>
    %219 = tpu.concatenate %217, %218 in 1 : vector<16x64xf32>, vector<16x64xf32> -> vector<16x128xf32>
    %220 = arith.truncf %219 : vector<16x128xf32> to vector<16x128xbf16>
    %c0_65 = arith.constant 0 : index
    %c0_66 = arith.constant 0 : index
    %221 = vector.load %arg4[%c0_65, %c0_66] : memref<128x256xbf16, #tpu.memory_space<vmem>>, vector<128x256xbf16>
    %c0_67 = arith.constant 0 : index
    %c0_68 = arith.constant 0 : index
    %222 = vector.load %arg5[%c0_67, %c0_68] : memref<64x256xbf16, #tpu.memory_space<vmem>>, vector<64x256xbf16>
    %c0_69 = arith.constant 0 : index
    %c0_70 = arith.constant 0 : index
    %223 = vector.load %arg6[%c0_69, %c0_70] : memref<1x256xf32, #tpu.memory_space<vmem>>, vector<1x256xf32>
    %cst_71 = arith.constant dense<0.000000e+00> : vector<16x256xf32>
    %224 = tpu.matmul %220, %221, %cst_71 {dimension_numbers = #tpu.dot_dimension_numbers<[1], [0], [0], [1], [0, 0, 1, 1], [], []>} : vector<16x128xbf16>, vector<128x256xbf16>, vector<16x256xf32> -> vector<16x256xf32>
    %225 = vector.broadcast %223 : vector<1x256xf32> to vector<16x256xf32>
    %226 = arith.addf %224, %225 : vector<16x256xf32>
    %cst_72 = arith.constant 0.000000e+00 : f32
    %227 = vector.broadcast %cst_72 : f32 to vector<2x64xf32>
    %cst_73 = arith.constant 0.000000e+00 : f32
    %228 = vector.broadcast %cst_73 : f32 to vector<2x64xf32>
    %229 = vector.extract_strided_slice %226 {offsets = [0, 0], sizes = [2, 256], strides = [1, 1]} : vector<16x256xf32> to vector<2x256xf32>
    %230 = arith.truncf %227 : vector<2x64xf32> to vector<2x64xbf16>
    %cst_74 = arith.constant dense<0.000000e+00> : vector<2x256xf32>
    %231 = tpu.matmul %230, %222, %cst_74 {dimension_numbers = #tpu.dot_dimension_numbers<[1], [0], [0], [1], [0, 0, 1, 1], [], []>} : vector<2x64xbf16>, vector<64x256xbf16>, vector<2x256xf32> -> vector<2x256xf32>
    %232 = arith.addf %229, %231 : vector<2x256xf32>
    %233 = math.tanh %232 : vector<2x256xf32>
    %234 = vector.extract_strided_slice %233 {offsets = [0, 0], sizes = [2, 64], strides = [1, 1]} : vector<2x256xf32> to vector<2x64xf32>
    %cst_75 = arith.constant 5.000000e-01 : f32
    %235 = vector.broadcast %cst_75 : f32 to vector<2x64xf32>
    %236 = arith.mulf %235, %234 : vector<2x64xf32>
    %cst_76 = arith.constant 5.000000e-01 : f32
    %237 = vector.broadcast %cst_76 : f32 to vector<2x64xf32>
    %238 = arith.addf %236, %237 : vector<2x64xf32>
    %239 = vector.extract_strided_slice %233 {offsets = [0, 64], sizes = [2, 64], strides = [1, 1]} : vector<2x256xf32> to vector<2x64xf32>
    %cst_77 = arith.constant 5.000000e-01 : f32
    %240 = vector.broadcast %cst_77 : f32 to vector<2x64xf32>
    %241 = arith.mulf %240, %239 : vector<2x64xf32>
    %cst_78 = arith.constant 5.000000e-01 : f32
    %242 = vector.broadcast %cst_78 : f32 to vector<2x64xf32>
    %243 = arith.addf %241, %242 : vector<2x64xf32>
    %244 = vector.extract_strided_slice %233 {offsets = [0, 128], sizes = [2, 64], strides = [1, 1]} : vector<2x256xf32> to vector<2x64xf32>
    %245 = vector.extract_strided_slice %233 {offsets = [0, 192], sizes = [2, 64], strides = [1, 1]} : vector<2x256xf32> to vector<2x64xf32>
    %cst_79 = arith.constant 5.000000e-01 : f32
    %246 = vector.broadcast %cst_79 : f32 to vector<2x64xf32>
    %247 = arith.mulf %246, %245 : vector<2x64xf32>
    %cst_80 = arith.constant 5.000000e-01 : f32
    %248 = vector.broadcast %cst_80 : f32 to vector<2x64xf32>
    %249 = arith.addf %247, %248 : vector<2x64xf32>
    %250 = arith.mulf %243, %228 : vector<2x64xf32>
    %251 = arith.mulf %238, %244 : vector<2x64xf32>
    %252 = arith.addf %250, %251 : vector<2x64xf32>
    %253 = math.tanh %252 : vector<2x64xf32>
    %254 = arith.mulf %249, %253 : vector<2x64xf32>
    %255 = vector.extract_strided_slice %226 {offsets = [2, 0], sizes = [2, 256], strides = [1, 1]} : vector<16x256xf32> to vector<2x256xf32>
    %256 = arith.truncf %254 : vector<2x64xf32> to vector<2x64xbf16>
    %cst_81 = arith.constant dense<0.000000e+00> : vector<2x256xf32>
    %257 = tpu.matmul %256, %222, %cst_81 {dimension_numbers = #tpu.dot_dimension_numbers<[1], [0], [0], [1], [0, 0, 1, 1], [], []>} : vector<2x64xbf16>, vector<64x256xbf16>, vector<2x256xf32> -> vector<2x256xf32>
    %258 = arith.addf %255, %257 : vector<2x256xf32>
    %259 = math.tanh %258 : vector<2x256xf32>
    %260 = vector.extract_strided_slice %259 {offsets = [0, 0], sizes = [2, 64], strides = [1, 1]} : vector<2x256xf32> to vector<2x64xf32>
    %cst_82 = arith.constant 5.000000e-01 : f32
    %261 = vector.broadcast %cst_82 : f32 to vector<2x64xf32>
    %262 = arith.mulf %261, %260 : vector<2x64xf32>
    %cst_83 = arith.constant 5.000000e-01 : f32
    %263 = vector.broadcast %cst_83 : f32 to vector<2x64xf32>
    %264 = arith.addf %262, %263 : vector<2x64xf32>
    %265 = vector.extract_strided_slice %259 {offsets = [0, 64], sizes = [2, 64], strides = [1, 1]} : vector<2x256xf32> to vector<2x64xf32>
    %cst_84 = arith.constant 5.000000e-01 : f32
    %266 = vector.broadcast %cst_84 : f32 to vector<2x64xf32>
    %267 = arith.mulf %266, %265 : vector<2x64xf32>
    %cst_85 = arith.constant 5.000000e-01 : f32
    %268 = vector.broadcast %cst_85 : f32 to vector<2x64xf32>
    %269 = arith.addf %267, %268 : vector<2x64xf32>
    %270 = vector.extract_strided_slice %259 {offsets = [0, 128], sizes = [2, 64], strides = [1, 1]} : vector<2x256xf32> to vector<2x64xf32>
    %271 = vector.extract_strided_slice %259 {offsets = [0, 192], sizes = [2, 64], strides = [1, 1]} : vector<2x256xf32> to vector<2x64xf32>
    %cst_86 = arith.constant 5.000000e-01 : f32
    %272 = vector.broadcast %cst_86 : f32 to vector<2x64xf32>
    %273 = arith.mulf %272, %271 : vector<2x64xf32>
    %cst_87 = arith.constant 5.000000e-01 : f32
    %274 = vector.broadcast %cst_87 : f32 to vector<2x64xf32>
    %275 = arith.addf %273, %274 : vector<2x64xf32>
    %276 = arith.mulf %269, %252 : vector<2x64xf32>
    %277 = arith.mulf %264, %270 : vector<2x64xf32>
    %278 = arith.addf %276, %277 : vector<2x64xf32>
    %279 = math.tanh %278 : vector<2x64xf32>
    %280 = arith.mulf %275, %279 : vector<2x64xf32>
    %281 = vector.extract_strided_slice %226 {offsets = [4, 0], sizes = [2, 256], strides = [1, 1]} : vector<16x256xf32> to vector<2x256xf32>
    %282 = arith.truncf %280 : vector<2x64xf32> to vector<2x64xbf16>
    %cst_88 = arith.constant dense<0.000000e+00> : vector<2x256xf32>
    %283 = tpu.matmul %282, %222, %cst_88 {dimension_numbers = #tpu.dot_dimension_numbers<[1], [0], [0], [1], [0, 0, 1, 1], [], []>} : vector<2x64xbf16>, vector<64x256xbf16>, vector<2x256xf32> -> vector<2x256xf32>
    %284 = arith.addf %281, %283 : vector<2x256xf32>
    %285 = math.tanh %284 : vector<2x256xf32>
    %286 = vector.extract_strided_slice %285 {offsets = [0, 0], sizes = [2, 64], strides = [1, 1]} : vector<2x256xf32> to vector<2x64xf32>
    %cst_89 = arith.constant 5.000000e-01 : f32
    %287 = vector.broadcast %cst_89 : f32 to vector<2x64xf32>
    %288 = arith.mulf %287, %286 : vector<2x64xf32>
    %cst_90 = arith.constant 5.000000e-01 : f32
    %289 = vector.broadcast %cst_90 : f32 to vector<2x64xf32>
    %290 = arith.addf %288, %289 : vector<2x64xf32>
    %291 = vector.extract_strided_slice %285 {offsets = [0, 64], sizes = [2, 64], strides = [1, 1]} : vector<2x256xf32> to vector<2x64xf32>
    %cst_91 = arith.constant 5.000000e-01 : f32
    %292 = vector.broadcast %cst_91 : f32 to vector<2x64xf32>
    %293 = arith.mulf %292, %291 : vector<2x64xf32>
    %cst_92 = arith.constant 5.000000e-01 : f32
    %294 = vector.broadcast %cst_92 : f32 to vector<2x64xf32>
    %295 = arith.addf %293, %294 : vector<2x64xf32>
    %296 = vector.extract_strided_slice %285 {offsets = [0, 128], sizes = [2, 64], strides = [1, 1]} : vector<2x256xf32> to vector<2x64xf32>
    %297 = vector.extract_strided_slice %285 {offsets = [0, 192], sizes = [2, 64], strides = [1, 1]} : vector<2x256xf32> to vector<2x64xf32>
    %cst_93 = arith.constant 5.000000e-01 : f32
    %298 = vector.broadcast %cst_93 : f32 to vector<2x64xf32>
    %299 = arith.mulf %298, %297 : vector<2x64xf32>
    %cst_94 = arith.constant 5.000000e-01 : f32
    %300 = vector.broadcast %cst_94 : f32 to vector<2x64xf32>
    %301 = arith.addf %299, %300 : vector<2x64xf32>
    %302 = arith.mulf %295, %278 : vector<2x64xf32>
    %303 = arith.mulf %290, %296 : vector<2x64xf32>
    %304 = arith.addf %302, %303 : vector<2x64xf32>
    %305 = math.tanh %304 : vector<2x64xf32>
    %306 = arith.mulf %301, %305 : vector<2x64xf32>
    %307 = vector.extract_strided_slice %226 {offsets = [6, 0], sizes = [2, 256], strides = [1, 1]} : vector<16x256xf32> to vector<2x256xf32>
    %308 = arith.truncf %306 : vector<2x64xf32> to vector<2x64xbf16>
    %cst_95 = arith.constant dense<0.000000e+00> : vector<2x256xf32>
    %309 = tpu.matmul %308, %222, %cst_95 {dimension_numbers = #tpu.dot_dimension_numbers<[1], [0], [0], [1], [0, 0, 1, 1], [], []>} : vector<2x64xbf16>, vector<64x256xbf16>, vector<2x256xf32> -> vector<2x256xf32>
    %310 = arith.addf %307, %309 : vector<2x256xf32>
    %311 = math.tanh %310 : vector<2x256xf32>
    %312 = vector.extract_strided_slice %311 {offsets = [0, 0], sizes = [2, 64], strides = [1, 1]} : vector<2x256xf32> to vector<2x64xf32>
    %cst_96 = arith.constant 5.000000e-01 : f32
    %313 = vector.broadcast %cst_96 : f32 to vector<2x64xf32>
    %314 = arith.mulf %313, %312 : vector<2x64xf32>
    %cst_97 = arith.constant 5.000000e-01 : f32
    %315 = vector.broadcast %cst_97 : f32 to vector<2x64xf32>
    %316 = arith.addf %314, %315 : vector<2x64xf32>
    %317 = vector.extract_strided_slice %311 {offsets = [0, 64], sizes = [2, 64], strides = [1, 1]} : vector<2x256xf32> to vector<2x64xf32>
    %cst_98 = arith.constant 5.000000e-01 : f32
    %318 = vector.broadcast %cst_98 : f32 to vector<2x64xf32>
    %319 = arith.mulf %318, %317 : vector<2x64xf32>
    %cst_99 = arith.constant 5.000000e-01 : f32
    %320 = vector.broadcast %cst_99 : f32 to vector<2x64xf32>
    %321 = arith.addf %319, %320 : vector<2x64xf32>
    %322 = vector.extract_strided_slice %311 {offsets = [0, 128], sizes = [2, 64], strides = [1, 1]} : vector<2x256xf32> to vector<2x64xf32>
    %323 = vector.extract_strided_slice %311 {offsets = [0, 192], sizes = [2, 64], strides = [1, 1]} : vector<2x256xf32> to vector<2x64xf32>
    %cst_100 = arith.constant 5.000000e-01 : f32
    %324 = vector.broadcast %cst_100 : f32 to vector<2x64xf32>
    %325 = arith.mulf %324, %323 : vector<2x64xf32>
    %cst_101 = arith.constant 5.000000e-01 : f32
    %326 = vector.broadcast %cst_101 : f32 to vector<2x64xf32>
    %327 = arith.addf %325, %326 : vector<2x64xf32>
    %328 = arith.mulf %321, %304 : vector<2x64xf32>
    %329 = arith.mulf %316, %322 : vector<2x64xf32>
    %330 = arith.addf %328, %329 : vector<2x64xf32>
    %331 = math.tanh %330 : vector<2x64xf32>
    %332 = arith.mulf %327, %331 : vector<2x64xf32>
    %333 = vector.extract_strided_slice %226 {offsets = [8, 0], sizes = [2, 256], strides = [1, 1]} : vector<16x256xf32> to vector<2x256xf32>
    %334 = arith.truncf %332 : vector<2x64xf32> to vector<2x64xbf16>
    %cst_102 = arith.constant dense<0.000000e+00> : vector<2x256xf32>
    %335 = tpu.matmul %334, %222, %cst_102 {dimension_numbers = #tpu.dot_dimension_numbers<[1], [0], [0], [1], [0, 0, 1, 1], [], []>} : vector<2x64xbf16>, vector<64x256xbf16>, vector<2x256xf32> -> vector<2x256xf32>
    %336 = arith.addf %333, %335 : vector<2x256xf32>
    %337 = math.tanh %336 : vector<2x256xf32>
    %338 = vector.extract_strided_slice %337 {offsets = [0, 0], sizes = [2, 64], strides = [1, 1]} : vector<2x256xf32> to vector<2x64xf32>
    %cst_103 = arith.constant 5.000000e-01 : f32
    %339 = vector.broadcast %cst_103 : f32 to vector<2x64xf32>
    %340 = arith.mulf %339, %338 : vector<2x64xf32>
    %cst_104 = arith.constant 5.000000e-01 : f32
    %341 = vector.broadcast %cst_104 : f32 to vector<2x64xf32>
    %342 = arith.addf %340, %341 : vector<2x64xf32>
    %343 = vector.extract_strided_slice %337 {offsets = [0, 64], sizes = [2, 64], strides = [1, 1]} : vector<2x256xf32> to vector<2x64xf32>
    %cst_105 = arith.constant 5.000000e-01 : f32
    %344 = vector.broadcast %cst_105 : f32 to vector<2x64xf32>
    %345 = arith.mulf %344, %343 : vector<2x64xf32>
    %cst_106 = arith.constant 5.000000e-01 : f32
    %346 = vector.broadcast %cst_106 : f32 to vector<2x64xf32>
    %347 = arith.addf %345, %346 : vector<2x64xf32>
    %348 = vector.extract_strided_slice %337 {offsets = [0, 128], sizes = [2, 64], strides = [1, 1]} : vector<2x256xf32> to vector<2x64xf32>
    %349 = vector.extract_strided_slice %337 {offsets = [0, 192], sizes = [2, 64], strides = [1, 1]} : vector<2x256xf32> to vector<2x64xf32>
    %cst_107 = arith.constant 5.000000e-01 : f32
    %350 = vector.broadcast %cst_107 : f32 to vector<2x64xf32>
    %351 = arith.mulf %350, %349 : vector<2x64xf32>
    %cst_108 = arith.constant 5.000000e-01 : f32
    %352 = vector.broadcast %cst_108 : f32 to vector<2x64xf32>
    %353 = arith.addf %351, %352 : vector<2x64xf32>
    %354 = arith.mulf %347, %330 : vector<2x64xf32>
    %355 = arith.mulf %342, %348 : vector<2x64xf32>
    %356 = arith.addf %354, %355 : vector<2x64xf32>
    %357 = math.tanh %356 : vector<2x64xf32>
    %358 = arith.mulf %353, %357 : vector<2x64xf32>
    %359 = vector.extract_strided_slice %226 {offsets = [10, 0], sizes = [2, 256], strides = [1, 1]} : vector<16x256xf32> to vector<2x256xf32>
    %360 = arith.truncf %358 : vector<2x64xf32> to vector<2x64xbf16>
    %cst_109 = arith.constant dense<0.000000e+00> : vector<2x256xf32>
    %361 = tpu.matmul %360, %222, %cst_109 {dimension_numbers = #tpu.dot_dimension_numbers<[1], [0], [0], [1], [0, 0, 1, 1], [], []>} : vector<2x64xbf16>, vector<64x256xbf16>, vector<2x256xf32> -> vector<2x256xf32>
    %362 = arith.addf %359, %361 : vector<2x256xf32>
    %363 = math.tanh %362 : vector<2x256xf32>
    %364 = vector.extract_strided_slice %363 {offsets = [0, 0], sizes = [2, 64], strides = [1, 1]} : vector<2x256xf32> to vector<2x64xf32>
    %cst_110 = arith.constant 5.000000e-01 : f32
    %365 = vector.broadcast %cst_110 : f32 to vector<2x64xf32>
    %366 = arith.mulf %365, %364 : vector<2x64xf32>
    %cst_111 = arith.constant 5.000000e-01 : f32
    %367 = vector.broadcast %cst_111 : f32 to vector<2x64xf32>
    %368 = arith.addf %366, %367 : vector<2x64xf32>
    %369 = vector.extract_strided_slice %363 {offsets = [0, 64], sizes = [2, 64], strides = [1, 1]} : vector<2x256xf32> to vector<2x64xf32>
    %cst_112 = arith.constant 5.000000e-01 : f32
    %370 = vector.broadcast %cst_112 : f32 to vector<2x64xf32>
    %371 = arith.mulf %370, %369 : vector<2x64xf32>
    %cst_113 = arith.constant 5.000000e-01 : f32
    %372 = vector.broadcast %cst_113 : f32 to vector<2x64xf32>
    %373 = arith.addf %371, %372 : vector<2x64xf32>
    %374 = vector.extract_strided_slice %363 {offsets = [0, 128], sizes = [2, 64], strides = [1, 1]} : vector<2x256xf32> to vector<2x64xf32>
    %375 = vector.extract_strided_slice %363 {offsets = [0, 192], sizes = [2, 64], strides = [1, 1]} : vector<2x256xf32> to vector<2x64xf32>
    %cst_114 = arith.constant 5.000000e-01 : f32
    %376 = vector.broadcast %cst_114 : f32 to vector<2x64xf32>
    %377 = arith.mulf %376, %375 : vector<2x64xf32>
    %cst_115 = arith.constant 5.000000e-01 : f32
    %378 = vector.broadcast %cst_115 : f32 to vector<2x64xf32>
    %379 = arith.addf %377, %378 : vector<2x64xf32>
    %380 = arith.mulf %373, %356 : vector<2x64xf32>
    %381 = arith.mulf %368, %374 : vector<2x64xf32>
    %382 = arith.addf %380, %381 : vector<2x64xf32>
    %383 = math.tanh %382 : vector<2x64xf32>
    %384 = arith.mulf %379, %383 : vector<2x64xf32>
    %385 = vector.extract_strided_slice %226 {offsets = [12, 0], sizes = [2, 256], strides = [1, 1]} : vector<16x256xf32> to vector<2x256xf32>
    %386 = arith.truncf %384 : vector<2x64xf32> to vector<2x64xbf16>
    %cst_116 = arith.constant dense<0.000000e+00> : vector<2x256xf32>
    %387 = tpu.matmul %386, %222, %cst_116 {dimension_numbers = #tpu.dot_dimension_numbers<[1], [0], [0], [1], [0, 0, 1, 1], [], []>} : vector<2x64xbf16>, vector<64x256xbf16>, vector<2x256xf32> -> vector<2x256xf32>
    %388 = arith.addf %385, %387 : vector<2x256xf32>
    %389 = math.tanh %388 : vector<2x256xf32>
    %390 = vector.extract_strided_slice %389 {offsets = [0, 0], sizes = [2, 64], strides = [1, 1]} : vector<2x256xf32> to vector<2x64xf32>
    %cst_117 = arith.constant 5.000000e-01 : f32
    %391 = vector.broadcast %cst_117 : f32 to vector<2x64xf32>
    %392 = arith.mulf %391, %390 : vector<2x64xf32>
    %cst_118 = arith.constant 5.000000e-01 : f32
    %393 = vector.broadcast %cst_118 : f32 to vector<2x64xf32>
    %394 = arith.addf %392, %393 : vector<2x64xf32>
    %395 = vector.extract_strided_slice %389 {offsets = [0, 64], sizes = [2, 64], strides = [1, 1]} : vector<2x256xf32> to vector<2x64xf32>
    %cst_119 = arith.constant 5.000000e-01 : f32
    %396 = vector.broadcast %cst_119 : f32 to vector<2x64xf32>
    %397 = arith.mulf %396, %395 : vector<2x64xf32>
    %cst_120 = arith.constant 5.000000e-01 : f32
    %398 = vector.broadcast %cst_120 : f32 to vector<2x64xf32>
    %399 = arith.addf %397, %398 : vector<2x64xf32>
    %400 = vector.extract_strided_slice %389 {offsets = [0, 128], sizes = [2, 64], strides = [1, 1]} : vector<2x256xf32> to vector<2x64xf32>
    %401 = vector.extract_strided_slice %389 {offsets = [0, 192], sizes = [2, 64], strides = [1, 1]} : vector<2x256xf32> to vector<2x64xf32>
    %cst_121 = arith.constant 5.000000e-01 : f32
    %402 = vector.broadcast %cst_121 : f32 to vector<2x64xf32>
    %403 = arith.mulf %402, %401 : vector<2x64xf32>
    %cst_122 = arith.constant 5.000000e-01 : f32
    %404 = vector.broadcast %cst_122 : f32 to vector<2x64xf32>
    %405 = arith.addf %403, %404 : vector<2x64xf32>
    %406 = arith.mulf %399, %382 : vector<2x64xf32>
    %407 = arith.mulf %394, %400 : vector<2x64xf32>
    %408 = arith.addf %406, %407 : vector<2x64xf32>
    %409 = math.tanh %408 : vector<2x64xf32>
    %410 = arith.mulf %405, %409 : vector<2x64xf32>
    %411 = vector.extract_strided_slice %226 {offsets = [14, 0], sizes = [2, 256], strides = [1, 1]} : vector<16x256xf32> to vector<2x256xf32>
    %412 = arith.truncf %410 : vector<2x64xf32> to vector<2x64xbf16>
    %cst_123 = arith.constant dense<0.000000e+00> : vector<2x256xf32>
    %413 = tpu.matmul %412, %222, %cst_123 {dimension_numbers = #tpu.dot_dimension_numbers<[1], [0], [0], [1], [0, 0, 1, 1], [], []>} : vector<2x64xbf16>, vector<64x256xbf16>, vector<2x256xf32> -> vector<2x256xf32>
    %414 = arith.addf %411, %413 : vector<2x256xf32>
    %415 = math.tanh %414 : vector<2x256xf32>
    %416 = vector.extract_strided_slice %415 {offsets = [0, 0], sizes = [2, 64], strides = [1, 1]} : vector<2x256xf32> to vector<2x64xf32>
    %cst_124 = arith.constant 5.000000e-01 : f32
    %417 = vector.broadcast %cst_124 : f32 to vector<2x64xf32>
    %418 = arith.mulf %417, %416 : vector<2x64xf32>
    %cst_125 = arith.constant 5.000000e-01 : f32
    %419 = vector.broadcast %cst_125 : f32 to vector<2x64xf32>
    %420 = arith.addf %418, %419 : vector<2x64xf32>
    %421 = vector.extract_strided_slice %415 {offsets = [0, 64], sizes = [2, 64], strides = [1, 1]} : vector<2x256xf32> to vector<2x64xf32>
    %cst_126 = arith.constant 5.000000e-01 : f32
    %422 = vector.broadcast %cst_126 : f32 to vector<2x64xf32>
    %423 = arith.mulf %422, %421 : vector<2x64xf32>
    %cst_127 = arith.constant 5.000000e-01 : f32
    %424 = vector.broadcast %cst_127 : f32 to vector<2x64xf32>
    %425 = arith.addf %423, %424 : vector<2x64xf32>
    %426 = vector.extract_strided_slice %415 {offsets = [0, 128], sizes = [2, 64], strides = [1, 1]} : vector<2x256xf32> to vector<2x64xf32>
    %427 = vector.extract_strided_slice %415 {offsets = [0, 192], sizes = [2, 64], strides = [1, 1]} : vector<2x256xf32> to vector<2x64xf32>
    %cst_128 = arith.constant 5.000000e-01 : f32
    %428 = vector.broadcast %cst_128 : f32 to vector<2x64xf32>
    %429 = arith.mulf %428, %427 : vector<2x64xf32>
    %cst_129 = arith.constant 5.000000e-01 : f32
    %430 = vector.broadcast %cst_129 : f32 to vector<2x64xf32>
    %431 = arith.addf %429, %430 : vector<2x64xf32>
    %432 = arith.mulf %425, %408 : vector<2x64xf32>
    %433 = arith.mulf %420, %426 : vector<2x64xf32>
    %434 = arith.addf %432, %433 : vector<2x64xf32>
    %435 = math.tanh %434 : vector<2x64xf32>
    %436 = arith.mulf %431, %435 : vector<2x64xf32>
    %437 = vector.extract_strided_slice %436 {offsets = [0, 0], sizes = [2, 32], strides = [1, 1]} : vector<2x64xf32> to vector<2x32xf32>
    %438 = vector.extract_strided_slice %254 {offsets = [0, 32], sizes = [2, 32], strides = [1, 1]} : vector<2x64xf32> to vector<2x32xf32>
    %439 = tpu.concatenate %437, %438 in 1 : vector<2x32xf32>, vector<2x32xf32> -> vector<2x64xf32>
    %c0_130 = arith.constant 0 : index
    %c0_131 = arith.constant 0 : index
    %440 = vector.load %arg7[%c0_130, %c0_131] : memref<64x256xf32, #tpu.memory_space<vmem>>, vector<64x256xf32>
    %cst_132 = arith.constant dense<0.000000e+00> : vector<2x256xf32>
    %441 = tpu.matmul %439, %440, %cst_132 {dimension_numbers = #tpu.dot_dimension_numbers<[1], [0], [0], [1], [0, 0, 1, 1], [], []>} : vector<2x64xf32>, vector<64x256xf32>, vector<2x256xf32> -> vector<2x256xf32>
    %c0_133 = arith.constant 0 : index
    %c0_134 = arith.constant 0 : index
    %442 = vector.load %arg8[%c0_133, %c0_134] : memref<1x256xf32, #tpu.memory_space<vmem>>, vector<1x256xf32>
    %443 = vector.broadcast %442 : vector<1x256xf32> to vector<2x256xf32>
    %444 = arith.addf %441, %443 : vector<2x256xf32>
    %cst_135 = arith.constant 0.000000e+00 : f32
    %445 = vector.broadcast %cst_135 : f32 to vector<2x256xf32>
    %446 = arith.maximumf %444, %445 : vector<2x256xf32>
    %c0_136 = arith.constant 0 : index
    %c0_137 = arith.constant 0 : index
    %447 = vector.load %arg9[%c0_136, %c0_137] : memref<256x2xf32, #tpu.memory_space<vmem>>, vector<256x2xf32>
    %cst_138 = arith.constant dense<0.000000e+00> : vector<2x2xf32>
    %448 = tpu.matmul %446, %447, %cst_138 {dimension_numbers = #tpu.dot_dimension_numbers<[1], [0], [0], [1], [0, 0, 1, 1], [], []>} : vector<2x256xf32>, vector<256x2xf32>, vector<2x2xf32> -> vector<2x2xf32>
    %c0_139 = arith.constant 0 : index
    %c0_140 = arith.constant 0 : index
    %449 = vector.load %arg10[%c0_139, %c0_140] : memref<1x2xf32, #tpu.memory_space<vmem>>, vector<1x2xf32>
    %450 = vector.broadcast %449 : vector<1x2xf32> to vector<2x2xf32>
    %451 = arith.addf %448, %450 : vector<2x2xf32>
    %cst_141 = arith.constant 2.000000e+01 : f32
    %452 = vector.broadcast %cst_141 : f32 to vector<2x2xf32>
    %453 = arith.cmpf ogt, %451, %452 : vector<2x2xf32>
    %cst_142 = arith.constant 2.000000e+01 : f32
    %454 = vector.broadcast %cst_142 : f32 to vector<2x2xf32>
    %455 = arith.minimumf %451, %454 : vector<2x2xf32>
    %456 = math.exp %455 : vector<2x2xf32>
    %457 = math.log1p %456 : vector<2x2xf32>
    %458 = arith.select %453, %451, %457 : vector<2x2xi1>, vector<2x2xf32>
    %459 = tpu.iota {dimensions = array<i32: 1>} : vector<2x2xi32>
    %c1_i32 = arith.constant 1 : i32
    %460 = vector.broadcast %c1_i32 : i32 to vector<2x2xi32>
    %461 = arith.cmpi sge, %459, %460 : vector<2x2xi32>
    %462 = arith.select %461, %458, %451 : vector<2x2xi1>, vector<2x2xf32>
    %c0_143 = arith.constant 0 : index
    %c0_144 = arith.constant 0 : index
    %463 = vector.load %arg11[%c0_143, %c0_144] : memref<2x2xf32, #tpu.memory_space<vmem>>, vector<2x2xf32>
    tpu.vector_store %arg11[%c0_143, %c0_144], %462 {strides = array<i32>} : memref<2x2xf32, #tpu.memory_space<vmem>>, vector<2x2xf32>,
    return
  }
}

</mosaic_0001>

<llo_original>
// kernel: _lambda_.1
$region0: #{_lambda_.1}
  #allocation0 [shape = 'u32[]', space=smem, size = 0x4, offset = 0x4, fixed_abs, tag = 'smem constant byte address 0x4 - core index']
  #allocation1 [shape = 'u32[144,128]{1,0:T(1,128)}', space=vmem, size = 0x12000, scoped, tag = 'internal scratch']
  %s0 = inlined_call_operand.vmem [shape: bf16[16,16], index: 0, kind: input, shape index: {}]
  %s1 = inlined_call_operand.vmem [shape: bf16[16,256], index: 1, kind: input, shape index: {}]
  %s2 = inlined_call_operand.vmem [shape: bf16[64,256], index: 2, kind: input, shape index: {}]
  %s3 = inlined_call_operand.vmem [shape: f32[1,256], index: 3, kind: input, shape index: {}]
  %s4 = inlined_call_operand.vmem [shape: bf16[128,256], index: 4, kind: input, shape index: {}]
  %s5 = inlined_call_operand.hbm [shape: bf16[64,256], index: 5, kind: input, shape index: {}]
  %s6 = inlined_call_operand.vmem [shape: f32[1,256], index: 6, kind: input, shape index: {}]
  %s7 = inlined_call_operand.vmem [shape: f32[64,256], index: 7, kind: input, shape index: {}]
  %s8 = inlined_call_operand.vmem [shape: f32[1,256], index: 8, kind: input, shape index: {}]
  %s9 = inlined_call_operand.vmem [shape: f32[256,2], index: 9, kind: input, shape index: {}]
  %s10 = inlined_call_operand.vmem [shape: f32[1,2], index: 10, kind: input, shape index: {}]
  %s11 = inlined_call_operand.vmem [shape: f32[2,2], index: 11, kind: output, shape index: {}]
  %s12 = sld [smem:[#allocation0]]
  $region58: #{_lambda_.1} parent=0
    _
  %s14 = ssub.s32 1, %s12
  %s15 = scalar_select 0, %s14, %s12
  $region1: #{_lambda_.1} parent=0
    #allocation2 [shape = 'u8[32768]{0}', space=vmem, size = 0x8000, scoped, tag = 'input window, operand 5, single buffered']
    #allocation3 [shape = 's32[1]{0}', space=sflag, size = 0x4, scoped, tag = 'scoped memory for _lambda_.1']
    %16 = vsyncpa [#allocation3], 0
    // Predicated region
    $region2: #{_lambda_.1} parent=1 // pred_check
      _
    $region3: #{_lambda_.1} parent=1 // pred_check_branch
      %18 = sbr.rel (0) target = $region5
    $region4: #{_lambda_.1} parent=1 // pred_region
      _
    $region5: #{_lambda_.1} parent=1 // pred_fallthru
      _
    // Predicated region
    $region6: #{_lambda_.1} parent=1 // pred_check
      _
    $region7: #{_lambda_.1} parent=1 // pred_check_branch
      %20 = sbr.rel (0) target = $region9
    $region8: #{_lambda_.1} parent=1 // pred_region
      _
    $region9: #{_lambda_.1} parent=1 // pred_fallthru
      _
    // Predicated region
    $region10: #{_lambda_.1} parent=1 // pred_check
      _
    $region11: #{_lambda_.1} parent=1 // pred_check_branch
      %22 = sbr.rel (0) target = $region13
    $region12: #{_lambda_.1} parent=1 // pred_region
      _
    $region13: #{_lambda_.1} parent=1 // pred_fallthru
      _
    // Predicated region
    $region14: #{_lambda_.1} parent=1 // pred_check
      _
    $region15: #{_lambda_.1} parent=1 // pred_check_branch
      %24 = sbr.rel (0) target = $region17
    $region16: #{_lambda_.1} parent=1 // pred_region
      _
    $region17: #{_lambda_.1} parent=1 // pred_fallthru
      _
    // Predicated region
    $region18: #{_lambda_.1} parent=1 // pred_check
      _
    $region19: #{_lambda_.1} parent=1 // pred_check_branch
      %26 = sbr.rel (0) target = $region21
    $region20: #{_lambda_.1} parent=1 // pred_region
      _
    $region21: #{_lambda_.1} parent=1 // pred_fallthru
      _
    // Predicated region
    $region22: #{_lambda_.1} parent=1 // pred_check
      _
    $region23: #{_lambda_.1} parent=1 // pred_check_branch
      %28 = sbr.rel (0) target = $region25
    $region24: #{_lambda_.1} parent=1 // pred_region
      %s30 = ssub.s32 1024, 1024
      %31 = vsyncadd [#allocation3], %s30
      %s32 = sshll.u32 [#allocation2], 4
      %s33 = int_to_ptr.vmem [resolvable:$true] %s32
      %38 = dma.hbm_to_vmem [thread:$0]  %s5, 1024, %s33, [#allocation3], 128, 128, 8
    $region25: #{_lambda_.1} parent=1 // pred_fallthru
      _
    // Predicated region
    $region26: #{_lambda_.1} parent=1 // pred_check
      _
    $region27: #{_lambda_.1} parent=1 // pred_check_branch
      %40 = sbr.rel (0) target = $region29
    $region28: #{_lambda_.1} parent=1 // pred_region
      _
    $region29: #{_lambda_.1} parent=1 // pred_fallthru
      _
    // Predicated region
    $region30: #{_lambda_.1} parent=1 // pred_check
      _
    $region31: #{_lambda_.1} parent=1 // pred_check_branch
      %42 = sbr.rel (0) target = $region33
    $region32: #{_lambda_.1} parent=1 // pred_region
      _
    $region33: #{_lambda_.1} parent=1 // pred_fallthru
      _
    // Predicated region
    $region34: #{_lambda_.1} parent=1 // pred_check
      _
    $region35: #{_lambda_.1} parent=1 // pred_check_branch
      %44 = sbr.rel (0) target = $region37
    $region36: #{_lambda_.1} parent=1 // pred_region
      _
    $region37: #{_lambda_.1} parent=1 // pred_fallthru
      _
    // Predicated region
    $region38: #{_lambda_.1} parent=1 // pred_check
      _
    $region39: #{_lambda_.1} parent=1 // pred_check_branch
      %46 = sbr.rel (0) target = $region41
    $region40: #{_lambda_.1} parent=1 // pred_region
      _
    $region41: #{_lambda_.1} parent=1 // pred_fallthru
      _
    // Predicated region
    $region42: #{_lambda_.1} parent=1 // pred_check
      _
    $region43: #{_lambda_.1} parent=1 // pred_check_branch
      %48 = sbr.rel (0) target = $region45
    $region44: #{_lambda_.1} parent=1 // pred_region
      _
    $region45: #{_lambda_.1} parent=1 // pred_fallthru
      _
    // Predicated region
    $region46: #{_lambda_.1} parent=1 // pred_check
      _
    $region47: #{_lambda_.1} parent=1 // pred_check_branch
      %50 = sbr.rel (0) target = $region49
    $region48: #{_lambda_.1} parent=1 // pred_region
      %51 = dma.done [#allocation3], 1024
    $region49: #{_lambda_.1} parent=1 // pred_fallthru
      _
    %v53 = vld [vmem:[%s0] sm:$0xf]
    %v54 = vld [vmem:[%s0 + $0x4] sm:$0xf]
    %v55 = vld [vmem:[%s1] sm:$0xff]
    %v56 = vld [vmem:[%s1 + $0x8] sm:$0xff]
    %v57 = vld [vmem:[%s2] sm:$0xff]
    %v58 = vld [vmem:[%s2 + $0x8] sm:$0xff]
    %v59 = vld [vmem:[%s2 + $0x10] sm:$0xff]
    %v60 = vld [vmem:[%s2 + $0x18] sm:$0xff]
    %v61 = vld [vmem:[%s2 + $0x20] sm:$0xff]
    %v62 = vld [vmem:[%s2 + $0x28] sm:$0xff]
    %v63 = vld [vmem:[%s2 + $0x30] sm:$0xff]
    %v64 = vld [vmem:[%s2 + $0x38] sm:$0xff]
    %v65 = vld [vmem:[%s3] sm:$0x3]
    %v67 = vlaneseq
    %v68 = vshrl.u32 %v67, 7
    %v69 = vsub.s32 0, %v68
    %v70 = vrot.slane %v65, %v69
    %v71 = vlaneseq
    %v72 = vshrl.u32 %v71, 7
    %v73 = vsub.s32 1, %v72
    %v74 = vrot.slane %v65, %v73
    %v79 = vunpack.c.l.b16 %v53
    %v80 = vunpack.c.l.b16 %v54
    %v81 = vpack.c.b16 %v80, %v79
    %v84 = vunpack.c.l.b16 %v55
    %v85 = vunpack.c.h.b16 %v55
    %v86 = vunpack.c.l.b16 %v56
    %v87 = vunpack.c.h.b16 %v56
    %v88 = vpack.c.b16 %v86, %v84
    %v89 = vpack.c.b16 %v87, %v85
    %vm92 = vcmask 130048
    %v94 = vsel %vm92, %v81, 0
    %96 = vmatprep.subr.bf16.mxu0 %v89
    %97 = vmatpush1.bf16.msra.mxu0 %v88
    %98 = vmatprep.subr.bf16.mxu0 0
    %99 = vmatpush1.bf16.msra.mxu0 0
    %100 = vmatprep.subr.bf16.mxu0 0
    %101 = vmatpush1.bf16.msra.mxu0 0
    %102 = vmatprep.subr.bf16.mxu0 0
    %103 = vmatpush1.bf16.msra.mxu0 0
    %104 = vmatprep.subr.bf16.mxu0 0
    %105 = vmatpush1.bf16.msra.mxu0 0
    %106 = vmatprep.subr.bf16.mxu0 0
    %107 = vmatpush1.bf16.msra.mxu0 0
    %108 = vmatprep.subr.bf16.mxu0 0
    %109 = vmatpush1.bf16.msra.mxu0 0
    %110 = vmatprep.subr.bf16.mxu0 0
    %111 = vmatpush1.bf16.msra.mxu0 0
    %112 = vmatprep.subr.bf16.mxu0 0
    %113 = vmatpush1.bf16.msra.mxu0 0
    %114 = vmatprep.subr.bf16.mxu0 0
    %115 = vmatpush1.bf16.msra.mxu0 0
    %116 = vmatprep.subr.bf16.mxu0 0
    %117 = vmatpush1.bf16.msra.mxu0 0
    %118 = vmatprep.subr.bf16.mxu0 0
    %119 = vmatpush1.bf16.msra.mxu0 0
    %120 = vmatprep.subr.bf16.mxu0 0
    %121 = vmatpush1.bf16.msra.mxu0 0
    %122 = vmatprep.subr.bf16.mxu0 0
    %123 = vmatpush1.bf16.msra.mxu0 0
    %124 = vmatprep.subr.bf16.mxu0 0
    %125 = vmatpush1.bf16.msra.mxu0 0
    %126 = vmatprep.subr.bf16.mxu0 0
    %127 = vmatpush1.bf16.msra.mxu0 0
    %128 = vmatprep.mubr.bf16.mxu0 0
    %129 = vmatmul.mubr.bf16.gmra.mrb[0].mxu0 %v94
    %v130 = vpop.f32.mrb[0].mxu0
    %v131 = vadd.f32 %v70, %v130
    %v132 = vpop.f32.mrb[0].mxu0
    %v133 = vadd.f32 %v74, %v132
    %v134 = vpop.f32.mrb[0].mxu0
    %v135 = vadd.f32 %v70, %v134
    %v136 = vpop.f32.mrb[0].mxu0
    %v137 = vadd.f32 %v74, %v136
    %138 = vdwg.mxu0
    %v147 = vunpack.c.l.b16 %v57
    %v148 = vunpack.c.h.b16 %v57
    %v149 = vunpack.c.l.b16 %v58
    %v150 = vunpack.c.h.b16 %v58
    %v151 = vunpack.c.l.b16 %v59
    %v152 = vunpack.c.h.b16 %v59
    %v153 = vunpack.c.l.b16 %v60
    %v154 = vunpack.c.h.b16 %v60
    %v155 = vunpack.c.l.b16 %v61
    %v156 = vunpack.c.h.b16 %v61
    %v157 = vunpack.c.l.b16 %v62
    %v158 = vunpack.c.h.b16 %v62
    %v159 = vunpack.c.l.b16 %v63
    %v160 = vunpack.c.h.b16 %v63
    %v161 = vunpack.c.l.b16 %v64
    %v162 = vunpack.c.h.b16 %v64
    %v163 = vpack.c.b16 %v149, %v147
    %v164 = vpack.c.b16 %v150, %v148
    %v165 = vpack.c.b16 %v153, %v151
    %v166 = vpack.c.b16 %v154, %v152
    %v167 = vpack.c.b16 %v157, %v155
    %v168 = vpack.c.b16 %v158, %v156
    %v169 = vpack.c.b16 %v161, %v159
    %v170 = vpack.c.b16 %v162, %v160
    %vm179 = vcmask 523264
    %v181 = vsel %vm179, 0, 0
    %183 = vmatprep.subr.bf16.mxu0 %v164
    %184 = vmatpush1.bf16.msra.mxu0 %v163
    %185 = vmatprep.subr.bf16.mxu0 %v166
    %186 = vmatpush1.bf16.msra.mxu0 %v165
    %187 = vmatprep.subr.bf16.mxu0 %v168
    %188 = vmatpush1.bf16.msra.mxu0 %v167
    %189 = vmatprep.subr.bf16.mxu0 %v170
    %190 = vmatpush1.bf16.msra.mxu0 %v169
    %191 = vmatprep.subr.bf16.mxu0 0
    %192 = vmatpush1.bf16.msra.mxu0 0
    %193 = vmatprep.subr.bf16.mxu0 0
    %194 = vmatpush1.bf16.msra.mxu0 0
    %195 = vmatprep.subr.bf16.mxu0 0
    %196 = vmatpush1.bf16.msra.mxu0 0
    %197 = vmatprep.subr.bf16.mxu0 0
    %198 = vmatpush1.bf16.msra.mxu0 0
    %199 = vmatprep.subr.bf16.mxu0 0
    %200 = vmatpush1.bf16.msra.mxu0 0
    %201 = vmatprep.subr.bf16.mxu0 0
    %202 = vmatpush1.bf16.msra.mxu0 0
    %203 = vmatprep.subr.bf16.mxu0 0
    %204 = vmatpush1.bf16.msra.mxu0 0
    %205 = vmatprep.subr.bf16.mxu0 0
    %206 = vmatpush1.bf16.msra.mxu0 0
    %207 = vmatprep.subr.bf16.mxu0 0
    %208 = vmatpush1.bf16.msra.mxu0 0
    %209 = vmatprep.subr.bf16.mxu0 0
    %210 = vmatpush1.bf16.msra.mxu0 0
    %211 = vmatprep.subr.bf16.mxu0 0
    %212 = vmatpush1.bf16.msra.mxu0 0
    %213 = vmatprep.subr.bf16.mxu0 0
    %214 = vmatpush1.bf16.msra.mxu0 0
    %215 = vmatprep.mubr.bf16.mxu0 0
    %216 = vmatmul.mubr.bf16.gmra.mrb[0].mxu0 %v181
    %v217 = vpop.f32.mrb[0].mxu0
    %v218 = vadd.f32 0.0, %v217
    %v219 = vpop.f32.mrb[0].mxu0
    %v220 = vadd.f32 0.0, %v219
    %v221 = vpop.f32.mrb[0].mxu0
    %v222 = vpop.f32.mrb[0].mxu0
    %223 = vdwg.mxu0
    %v224 = vadd.f32 %v131, %v218
    %v225 = vadd.f32 %v133, %v220
    %v226 = vtanh.pop %v224
    %v227 = vtanh.pop %v225
    %v228 = vmul.f32 %v226, 0.5
    %v229 = vadd.f32 %v228, 0.5
    %v230 = vmul.f32 %v227, 0.5
    %v231 = vadd.f32 %v230, 0.5
    %v232 = vmul.f32 %v229, 0.0
    %v233 = vmul.f32 %v229, %v227
    %235 = vrot.lane.b32.xlu0 %v233, 64
    %v236 = vpop.permute.xlu0 %235
    %v238 = vadd.f32 %v232, %v236
    %v239 = vtanh.pop %v238
    %v240 = vmul.f32 %v231, %v239
    %v241 = vpack.c.bf16 %v240, %v240
    %243 = vrot.lane.b32.xlu0 %v241, 64
    %v244 = vpop.permute.xlu0 %243
    %v246 = vsel %vm179, %v244, 0
    %248 = vmatprep.subr.bf16.mxu0 %v164
    %249 = vmatpush1.bf16.msra.mxu0 %v163
    %250 = vmatprep.subr.bf16.mxu0 %v166
    %251 = vmatpush1.bf16.msra.mxu0 %v165
    %252 = vmatprep.subr.bf16.mxu0 %v168
    %253 = vmatpush1.bf16.msra.mxu0 %v167
    %254 = vmatprep.subr.bf16.mxu0 %v170
    %255 = vmatpush1.bf16.msra.mxu0 %v169
    %256 = vmatprep.subr.bf16.mxu0 0
    %257 = vmatpush1.bf16.msra.mxu0 0
    %258 = vmatprep.subr.bf16.mxu0 0
    %259 = vmatpush1.bf16.msra.mxu0 0
    %260 = vmatprep.subr.bf16.mxu0 0
    %261 = vmatpush1.bf16.msra.mxu0 0
    %262 = vmatprep.subr.bf16.mxu0 0
    %263 = vmatpush1.bf16.msra.mxu0 0
    %264 = vmatprep.subr.bf16.mxu0 0
    %265 = vmatpush1.bf16.msra.mxu0 0
    %266 = vmatprep.subr.bf16.mxu0 0
    %267 = vmatpush1.bf16.msra.mxu0 0
    %268 = vmatprep.subr.bf16.mxu0 0
    %269 = vmatpush1.bf16.msra.mxu0 0
    %270 = vmatprep.subr.bf16.mxu0 0
    %271 = vmatpush1.bf16.msra.mxu0 0
    %272 = vmatprep.subr.bf16.mxu0 0
    %273 = vmatpush1.bf16.msra.mxu0 0
    %274 = vmatprep.subr.bf16.mxu0 0
    %275 = vmatpush1.bf16.msra.mxu0 0
    %276 = vmatprep.subr.bf16.mxu0 0
    %277 = vmatpush1.bf16.msra.mxu0 0
    %278 = vmatprep.subr.bf16.mxu0 0
    %279 = vmatpush1.bf16.msra.mxu0 0
    %280 = vmatprep.mubr.bf16.mxu0 0
    %281 = vmatmul.mubr.bf16.gmra.mrb[0].mxu0 %v246
    %v282 = vpop.f32.mrb[0].mxu0
    %v283 = vadd.f32 0.0, %v282
    %v284 = vpop.f32.mrb[0].mxu0
    %v285 = vadd.f32 0.0, %v284
    %v286 = vpop.f32.mrb[0].mxu0
    %v287 = vpop.f32.mrb[0].mxu0
    %288 = vdwg.mxu0
    %v291 = vrot.slane %v283, 6
    %v292 = vrot.slane %v285, 6
    %v295 = vadd.f32 %v131, %v291
    %v296 = vadd.f32 %v133, %v292
    %v297 = vtanh.pop %v295
    %v298 = vtanh.pop %v296
    %v299 = vmul.f32 %v297, 0.5
    %v300 = vadd.f32 %v299, 0.5
    %v301 = vmul.f32 %v298, 0.5
    %v302 = vadd.f32 %v301, 0.5
    %v304 = vrot.slane %v238, 6
    %v306 = vmul.f32 %v300, %v304
    %v307 = vmul.f32 %v300, %v298
    %309 = vrot.lane.b32.xlu0 %v307, 64
    %v310 = vpop.permute.xlu0 %309
    %v312 = vadd.f32 %v306, %v310
    %v313 = vtanh.pop %v312
    %v314 = vmul.f32 %v302, %v313
    %v315 = vpack.c.bf16 %v314, %v314
    %v317 = vrot.slane %v315, 1
    %318 = vrot.lane.b32.xlu0 %v317, 64
    %v319 = vpop.permute.xlu0 %318
    %v321 = vsel %vm179, %v319, 0
    %323 = vmatprep.subr.bf16.mxu0 %v164
    %324 = vmatpush1.bf16.msra.mxu0 %v163
    %325 = vmatprep.subr.bf16.mxu0 %v166
    %326 = vmatpush1.bf16.msra.mxu0 %v165
    %327 = vmatprep.subr.bf16.mxu0 %v168
    %328 = vmatpush1.bf16.msra.mxu0 %v167
    %329 = vmatprep.subr.bf16.mxu0 %v170
    %330 = vmatpush1.bf16.msra.mxu0 %v169
    %331 = vmatprep.subr.bf16.mxu0 0
    %332 = vmatpush1.bf16.msra.mxu0 0
    %333 = vmatprep.subr.bf16.mxu0 0
    %334 = vmatpush1.bf16.msra.mxu0 0
    %335 = vmatprep.subr.bf16.mxu0 0
    %336 = vmatpush1.bf16.msra.mxu0 0
    %337 = vmatprep.subr.bf16.mxu0 0
    %338 = vmatpush1.bf16.msra.mxu0 0
    %339 = vmatprep.subr.bf16.mxu0 0
    %340 = vmatpush1.bf16.msra.mxu0 0
    %341 = vmatprep.subr.bf16.mxu0 0
    %342 = vmatpush1.bf16.msra.mxu0 0
    %343 = vmatprep.subr.bf16.mxu0 0
    %344 = vmatpush1.bf16.msra.mxu0 0
    %345 = vmatprep.subr.bf16.mxu0 0
    %346 = vmatpush1.bf16.msra.mxu0 0
    %347 = vmatprep.subr.bf16.mxu0 0
    %348 = vmatpush1.bf16.msra.mxu0 0
    %349 = vmatprep.subr.bf16.mxu0 0
    %350 = vmatpush1.bf16.msra.mxu0 0
    %351 = vmatprep.subr.bf16.mxu0 0
    %352 = vmatpush1.bf16.msra.mxu0 0
    %353 = vmatprep.subr.bf16.mxu0 0
    %354 = vmatpush1.bf16.msra.mxu0 0
    %355 = vmatprep.mubr.bf16.mxu0 0
    %356 = vmatmul.mubr.bf16.gmra.mrb[0].mxu0 %v321
    %v357 = vpop.f32.mrb[0].mxu0
    %v358 = vadd.f32 0.0, %v357
    %v359 = vpop.f32.mrb[0].mxu0
    %v360 = vadd.f32 0.0, %v359
    %v361 = vpop.f32.mrb[0].mxu0
    %v362 = vpop.f32.mrb[0].mxu0
    %363 = vdwg.mxu0
    %v366 = vrot.slane %v358, 4
    %v367 = vrot.slane %v360, 4
    %v370 = vadd.f32 %v131, %v366
    %v371 = vadd.f32 %v133, %v367
    %v372 = vtanh.pop %v370
    %v373 = vtanh.pop %v371
    %v374 = vmul.f32 %v372, 0.5
    %v375 = vadd.f32 %v374, 0.5
    %v376 = vmul.f32 %v373, 0.5
    %v377 = vadd.f32 %v376, 0.5
    %v379 = vrot.slane %v312, 6
    %v381 = vmul.f32 %v375, %v379
    %v382 = vmul.f32 %v375, %v373
    %384 = vrot.lane.b32.xlu0 %v382, 64
    %v385 = vpop.permute.xlu0 %384
    %v387 = vadd.f32 %v381, %v385
    %v388 = vtanh.pop %v387
    %v389 = vmul.f32 %v377, %v388
    %v390 = vpack.c.bf16 %v389, %v389
    %v392 = vrot.slane %v390, 2
    %393 = vrot.lane.b32.xlu0 %v392, 64
    %v394 = vpop.permute.xlu0 %393
    %v396 = vsel %vm179, %v394, 0
    %398 = vmatprep.subr.bf16.mxu0 %v164
    %399 = vmatpush1.bf16.msra.mxu0 %v163
    %400 = vmatprep.subr.bf16.mxu0 %v166
    %401 = vmatpush1.bf16.msra.mxu0 %v165
    %402 = vmatprep.subr.bf16.mxu0 %v168
    %403 = vmatpush1.bf16.msra.mxu0 %v167
    %404 = vmatprep.subr.bf16.mxu0 %v170
    %405 = vmatpush1.bf16.msra.mxu0 %v169
    %406 = vmatprep.subr.bf16.mxu0 0
    %407 = vmatpush1.bf16.msra.mxu0 0
    %408 = vmatprep.subr.bf16.mxu0 0
    %409 = vmatpush1.bf16.msra.mxu0 0
    %410 = vmatprep.subr.bf16.mxu0 0
    %411 = vmatpush1.bf16.msra.mxu0 0
    %412 = vmatprep.subr.bf16.mxu0 0
    %413 = vmatpush1.bf16.msra.mxu0 0
    %414 = vmatprep.subr.bf16.mxu0 0
    %415 = vmatpush1.bf16.msra.mxu0 0
    %416 = vmatprep.subr.bf16.mxu0 0
    %417 = vmatpush1.bf16.msra.mxu0 0
    %418 = vmatprep.subr.bf16.mxu0 0
    %419 = vmatpush1.bf16.msra.mxu0 0
    %420 = vmatprep.subr.bf16.mxu0 0
    %421 = vmatpush1.bf16.msra.mxu0 0
    %422 = vmatprep.subr.bf16.mxu0 0
    %423 = vmatpush1.bf16.msra.mxu0 0
    %424 = vmatprep.subr.bf16.mxu0 0
    %425 = vmatpush1.bf16.msra.mxu0 0
    %426 = vmatprep.subr.bf16.mxu0 0
    %427 = vmatpush1.bf16.msra.mxu0 0
    %428 = vmatprep.subr.bf16.mxu0 0
    %429 = vmatpush1.bf16.msra.mxu0 0
    %430 = vmatprep.mubr.bf16.mxu0 0
    %431 = vmatmul.mubr.bf16.gmra.mrb[0].mxu0 %v396
    %v432 = vpop.f32.mrb[0].mxu0
    %v433 = vadd.f32 0.0, %v432
    %v434 = vpop.f32.mrb[0].mxu0
    %v435 = vadd.f32 0.0, %v434
    %v436 = vpop.f32.mrb[0].mxu0
    %v437 = vpop.f32.mrb[0].mxu0
    %438 = vdwg.mxu0
    %v441 = vrot.slane %v433, 2
    %v442 = vrot.slane %v435, 2
    %v445 = vadd.f32 %v131, %v441
    %v446 = vadd.f32 %v133, %v442
    %v447 = vtanh.pop %v445
    %v448 = vtanh.pop %v446
    %v449 = vmul.f32 %v447, 0.5
    %v450 = vadd.f32 %v449, 0.5
    %v451 = vmul.f32 %v448, 0.5
    %v452 = vadd.f32 %v451, 0.5
    %v454 = vrot.slane %v387, 6
    %v456 = vmul.f32 %v450, %v454
    %v457 = vmul.f32 %v450, %v448
    %459 = vrot.lane.b32.xlu0 %v457, 64
    %v460 = vpop.permute.xlu0 %459
    %v462 = vadd.f32 %v456, %v460
    %v463 = vtanh.pop %v462
    %v464 = vmul.f32 %v452, %v463
    %v465 = vpack.c.bf16 %v464, %v464
    %v467 = vrot.slane %v465, 3
    %468 = vrot.lane.b32.xlu0 %v467, 64
    %v469 = vpop.permute.xlu0 %468
    %v471 = vsel %vm179, %v469, 0
    %473 = vmatprep.subr.bf16.mxu0 %v164
    %474 = vmatpush1.bf16.msra.mxu0 %v163
    %475 = vmatprep.subr.bf16.mxu0 %v166
    %476 = vmatpush1.bf16.msra.mxu0 %v165
    %477 = vmatprep.subr.bf16.mxu0 %v168
    %478 = vmatpush1.bf16.msra.mxu0 %v167
    %479 = vmatprep.subr.bf16.mxu0 %v170
    %480 = vmatpush1.bf16.msra.mxu0 %v169
    %481 = vmatprep.subr.bf16.mxu0 0
    %482 = vmatpush1.bf16.msra.mxu0 0
    %483 = vmatprep.subr.bf16.mxu0 0
    %484 = vmatpush1.bf16.msra.mxu0 0
    %485 = vmatprep.subr.bf16.mxu0 0
    %486 = vmatpush1.bf16.msra.mxu0 0
    %487 = vmatprep.subr.bf16.mxu0 0
    %488 = vmatpush1.bf16.msra.mxu0 0
    %489 = vmatprep.subr.bf16.mxu0 0
    %490 = vmatpush1.bf16.msra.mxu0 0
    %491 = vmatprep.subr.bf16.mxu0 0
    %492 = vmatpush1.bf16.msra.mxu0 0
    %493 = vmatprep.subr.bf16.mxu0 0
    %494 = vmatpush1.bf16.msra.mxu0 0
    %495 = vmatprep.subr.bf16.mxu0 0
    %496 = vmatpush1.bf16.msra.mxu0 0
    %497 = vmatprep.subr.bf16.mxu0 0
    %498 = vmatpush1.bf16.msra.mxu0 0
    %499 = vmatprep.subr.bf16.mxu0 0
    %500 = vmatpush1.bf16.msra.mxu0 0
    %501 = vmatprep.subr.bf16.mxu0 0
    %502 = vmatpush1.bf16.msra.mxu0 0
    %503 = vmatprep.subr.bf16.mxu0 0
    %504 = vmatpush1.bf16.msra.mxu0 0
    %505 = vmatprep.mubr.bf16.mxu0 0
    %506 = vmatmul.mubr.bf16.gmra.mrb[0].mxu0 %v471
    %v507 = vpop.f32.mrb[0].mxu0
    %v508 = vadd.f32 0.0, %v507
    %v509 = vpop.f32.mrb[0].mxu0
    %v510 = vadd.f32 0.0, %v509
    %v511 = vpop.f32.mrb[0].mxu0
    %v512 = vpop.f32.mrb[0].mxu0
    %513 = vdwg.mxu0
    %v514 = vadd.f32 %v135, %v508
    %v515 = vadd.f32 %v137, %v510
    %v516 = vtanh.pop %v514
    %v517 = vtanh.pop %v515
    %v518 = vmul.f32 %v516, 0.5
    %v519 = vadd.f32 %v518, 0.5
    %v520 = vmul.f32 %v517, 0.5
    %v521 = vadd.f32 %v520, 0.5
    %v523 = vrot.slane %v462, 6
    %v525 = vmul.f32 %v519, %v523
    %v526 = vmul.f32 %v519, %v517
    %528 = vrot.lane.b32.xlu0 %v526, 64
    %v529 = vpop.permute.xlu0 %528
    %v531 = vadd.f32 %v525, %v529
    %v532 = vtanh.pop %v531
    %v533 = vmul.f32 %v521, %v532
    %v534 = vpack.c.bf16 %v533, %v533
    %536 = vrot.lane.b32.xlu0 %v534, 64
    %v537 = vpop.permute.xlu0 %536
    %v539 = vsel %vm179, %v537, 0
    %541 = vmatprep.subr.bf16.mxu0 %v164
    %542 = vmatpush1.bf16.msra.mxu0 %v163
    %543 = vmatprep.subr.bf16.mxu0 %v166
    %544 = vmatpush1.bf16.msra.mxu0 %v165
    %545 = vmatprep.subr.bf16.mxu0 %v168
    %546 = vmatpush1.bf16.msra.mxu0 %v167
    %547 = vmatprep.subr.bf16.mxu0 %v170
    %548 = vmatpush1.bf16.msra.mxu0 %v169
    %549 = vmatprep.subr.bf16.mxu0 0
    %550 = vmatpush1.bf16.msra.mxu0 0
    %551 = vmatprep.subr.bf16.mxu0 0
    %552 = vmatpush1.bf16.msra.mxu0 0
    %553 = vmatprep.subr.bf16.mxu0 0
    %554 = vmatpush1.bf16.msra.mxu0 0
    %555 = vmatprep.subr.bf16.mxu0 0
    %556 = vmatpush1.bf16.msra.mxu0 0
    %557 = vmatprep.subr.bf16.mxu0 0
    %558 = vmatpush1.bf16.msra.mxu0 0
    %559 = vmatprep.subr.bf16.mxu0 0
    %560 = vmatpush1.bf16.msra.mxu0 0
    %561 = vmatprep.subr.bf16.mxu0 0
    %562 = vmatpush1.bf16.msra.mxu0 0
    %563 = vmatprep.subr.bf16.mxu0 0
    %564 = vmatpush1.bf16.msra.mxu0 0
    %565 = vmatprep.subr.bf16.mxu0 0
    %566 = vmatpush1.bf16.msra.mxu0 0
    %567 = vmatprep.subr.bf16.mxu0 0
    %568 = vmatpush1.bf16.msra.mxu0 0
    %569 = vmatprep.subr.bf16.mxu0 0
    %570 = vmatpush1.bf16.msra.mxu0 0
    %571 = vmatprep.subr.bf16.mxu0 0
    %572 = vmatpush1.bf16.msra.mxu0 0
    %573 = vmatprep.mubr.bf16.mxu0 0
    %574 = vmatmul.mubr.bf16.gmra.mrb[0].mxu0 %v539
    %v575 = vpop.f32.mrb[0].mxu0
    %v576 = vadd.f32 0.0, %v575
    %v577 = vpop.f32.mrb[0].mxu0
    %v578 = vadd.f32 0.0, %v577
    %v579 = vpop.f32.mrb[0].mxu0
    %v580 = vpop.f32.mrb[0].mxu0
    %581 = vdwg.mxu0
    %v584 = vrot.slane %v576, 6
    %v585 = vrot.slane %v578, 6
    %v588 = vadd.f32 %v135, %v584
    %v589 = vadd.f32 %v137, %v585
    %v590 = vtanh.pop %v588
    %v591 = vtanh.pop %v589
    %v592 = vmul.f32 %v590, 0.5
    %v593 = vadd.f32 %v592, 0.5
    %v594 = vmul.f32 %v591, 0.5
    %v595 = vadd.f32 %v594, 0.5
    %v597 = vrot.slane %v531, 6
    %v599 = vmul.f32 %v593, %v597
    %v600 = vmul.f32 %v593, %v591
    %602 = vrot.lane.b32.xlu0 %v600, 64
    %v603 = vpop.permute.xlu0 %602
    %v605 = vadd.f32 %v599, %v603
    %v606 = vtanh.pop %v605
    %v607 = vmul.f32 %v595, %v606
    %v608 = vpack.c.bf16 %v607, %v607
    %v610 = vrot.slane %v608, 1
    %611 = vrot.lane.b32.xlu0 %v610, 64
    %v612 = vpop.permute.xlu0 %611
    %v614 = vsel %vm179, %v612, 0
    %616 = vmatprep.subr.bf16.mxu0 %v164
    %617 = vmatpush1.bf16.msra.mxu0 %v163
    %618 = vmatprep.subr.bf16.mxu0 %v166
    %619 = vmatpush1.bf16.msra.mxu0 %v165
    %620 = vmatprep.subr.bf16.mxu0 %v168
    %621 = vmatpush1.bf16.msra.mxu0 %v167
    %622 = vmatprep.subr.bf16.mxu0 %v170
    %623 = vmatpush1.bf16.msra.mxu0 %v169
    %624 = vmatprep.subr.bf16.mxu0 0
    %625 = vmatpush1.bf16.msra.mxu0 0
    %626 = vmatprep.subr.bf16.mxu0 0
    %627 = vmatpush1.bf16.msra.mxu0 0
    %628 = vmatprep.subr.bf16.mxu0 0
    %629 = vmatpush1.bf16.msra.mxu0 0
    %630 = vmatprep.subr.bf16.mxu0 0
    %631 = vmatpush1.bf16.msra.mxu0 0
    %632 = vmatprep.subr.bf16.mxu0 0
    %633 = vmatpush1.bf16.msra.mxu0 0
    %634 = vmatprep.subr.bf16.mxu0 0
    %635 = vmatpush1.bf16.msra.mxu0 0
    %636 = vmatprep.subr.bf16.mxu0 0
    %637 = vmatpush1.bf16.msra.mxu0 0
    %638 = vmatprep.subr.bf16.mxu0 0
    %639 = vmatpush1.bf16.msra.mxu0 0
    %640 = vmatprep.subr.bf16.mxu0 0
    %641 = vmatpush1.bf16.msra.mxu0 0
    %642 = vmatprep.subr.bf16.mxu0 0
    %643 = vmatpush1.bf16.msra.mxu0 0
    %644 = vmatprep.subr.bf16.mxu0 0
    %645 = vmatpush1.bf16.msra.mxu0 0
    %646 = vmatprep.subr.bf16.mxu0 0
    %647 = vmatpush1.bf16.msra.mxu0 0
    %648 = vmatprep.mubr.bf16.mxu0 0
    %649 = vmatmul.mubr.bf16.gmra.mrb[0].mxu0 %v614
    %v650 = vpop.f32.mrb[0].mxu0
    %v651 = vadd.f32 0.0, %v650
    %v652 = vpop.f32.mrb[0].mxu0
    %v653 = vadd.f32 0.0, %v652
    %v654 = vpop.f32.mrb[0].mxu0
    %v655 = vpop.f32.mrb[0].mxu0
    %656 = vdwg.mxu0
    %v659 = vrot.slane %v651, 4
    %v660 = vrot.slane %v653, 4
    %v663 = vadd.f32 %v135, %v659
    %v664 = vadd.f32 %v137, %v660
    %v665 = vtanh.pop %v663
    %v666 = vtanh.pop %v664
    %v667 = vmul.f32 %v665, 0.5
    %v668 = vadd.f32 %v667, 0.5
    %v669 = vmul.f32 %v666, 0.5
    %v670 = vadd.f32 %v669, 0.5
    %v672 = vrot.slane %v605, 6
    %v674 = vmul.f32 %v668, %v672
    %v675 = vmul.f32 %v668, %v666
    %677 = vrot.lane.b32.xlu0 %v675, 64
    %v678 = vpop.permute.xlu0 %677
    %v680 = vadd.f32 %v674, %v678
    %v681 = vtanh.pop %v680
    %v682 = vmul.f32 %v670, %v681
    %v683 = vpack.c.bf16 %v682, %v682
    %v685 = vrot.slane %v683, 2
    %686 = vrot.lane.b32.xlu0 %v685, 64
    %v687 = vpop.permute.xlu0 %686
    %v689 = vsel %vm179, %v687, 0
    %691 = vmatprep.subr.bf16.mxu0 %v164
    %692 = vmatpush1.bf16.msra.mxu0 %v163
    %693 = vmatprep.subr.bf16.mxu0 %v166
    %694 = vmatpush1.bf16.msra.mxu0 %v165
    %695 = vmatprep.subr.bf16.mxu0 %v168
    %696 = vmatpush1.bf16.msra.mxu0 %v167
    %697 = vmatprep.subr.bf16.mxu0 %v170
    %698 = vmatpush1.bf16.msra.mxu0 %v169
    %699 = vmatprep.subr.bf16.mxu0 0
    %700 = vmatpush1.bf16.msra.mxu0 0
    %701 = vmatprep.subr.bf16.mxu0 0
    %702 = vmatpush1.bf16.msra.mxu0 0
    %703 = vmatprep.subr.bf16.mxu0 0
    %704 = vmatpush1.bf16.msra.mxu0 0
    %705 = vmatprep.subr.bf16.mxu0 0
    %706 = vmatpush1.bf16.msra.mxu0 0
    %707 = vmatprep.subr.bf16.mxu0 0
    %708 = vmatpush1.bf16.msra.mxu0 0
    %709 = vmatprep.subr.bf16.mxu0 0
    %710 = vmatpush1.bf16.msra.mxu0 0
    %711 = vmatprep.subr.bf16.mxu0 0
    %712 = vmatpush1.bf16.msra.mxu0 0
    %713 = vmatprep.subr.bf16.mxu0 0
    %714 = vmatpush1.bf16.msra.mxu0 0
    %715 = vmatprep.subr.bf16.mxu0 0
    %716 = vmatpush1.bf16.msra.mxu0 0
    %717 = vmatprep.subr.bf16.mxu0 0
    %718 = vmatpush1.bf16.msra.mxu0 0
    %719 = vmatprep.subr.bf16.mxu0 0
    %720 = vmatpush1.bf16.msra.mxu0 0
    %721 = vmatprep.subr.bf16.mxu0 0
    %722 = vmatpush1.bf16.msra.mxu0 0
    %723 = vmatprep.mubr.bf16.mxu0 0
    %724 = vmatmul.mubr.bf16.gmra.mrb[0].mxu0 %v689
    %v725 = vpop.f32.mrb[0].mxu0
    %v726 = vadd.f32 0.0, %v725
    %v727 = vpop.f32.mrb[0].mxu0
    %v728 = vadd.f32 0.0, %v727
    %v729 = vpop.f32.mrb[0].mxu0
    %v730 = vpop.f32.mrb[0].mxu0
    %731 = vdwg.mxu0
    %v734 = vrot.slane %v726, 2
    %v735 = vrot.slane %v728, 2
    %v738 = vadd.f32 %v135, %v734
    %v739 = vadd.f32 %v137, %v735
    %v740 = vtanh.pop %v738
    %v741 = vtanh.pop %v739
    %v742 = vmul.f32 %v740, 0.5
    %v743 = vadd.f32 %v742, 0.5
    %v744 = vmul.f32 %v741, 0.5
    %v745 = vadd.f32 %v744, 0.5
    %v747 = vrot.slane %v680, 6
    %v749 = vmul.f32 %v743, %v747
    %v750 = vmul.f32 %v743, %v741
    %752 = vrot.lane.b32.xlu0 %v750, 64
    %v753 = vpop.permute.xlu0 %752
    %v755 = vadd.f32 %v749, %v753
    %v756 = vtanh.pop %v755
    %v757 = vmul.f32 %v745, %v756
    %vm758 = vcmask 1041408
    %v759 = vsel %vm758, %v240, %v314
    %vm760 = vcmask 1043456
    %v761 = vsel %vm760, %v759, %v389
    %vm762 = vcmask 1045504
    %v763 = vsel %vm762, %v761, %v464
    %v764 = vsel %vm758, %v533, %v607
    %v765 = vsel %vm760, %v764, %v682
    %v766 = vsel %vm762, %v765, %v757
    %v768 = vrot.slane %v757, 6
    %v771 = vrot.slane %v682, 2
    %v774 = vrot.slane %v607, 6
    %v777 = vrot.slane %v533, 2
    %v780 = vrot.slane %v464, 6
    %v783 = vrot.slane %v389, 2
    %v786 = vrot.slane %v314, 6
    %v789 = vrot.slane %v240, 2
    %v791 = vsel %vm758, %v768, %v771
    %v792 = vsel %vm760, %v791, %v774
    %v793 = vsel %vm762, %v792, %v777
    %v794 = vsel %vm758, %v780, %v783
    %v795 = vsel %vm760, %v794, %v786
    %v796 = vsel %vm762, %v795, %v789
    %799 = vrot.lane.b32.xlu0 %v763, 64
    %v800 = vpop.permute.xlu0 %799
    %801 = vrot.lane.b32.xlu0 %v766, 64
    %v802 = vpop.permute.xlu0 %801
    %v805 = vsel %vm179, %v800, %v793
    %v806 = vsel %vm179, %v802, %v796
    %v807 = vpack.c.bf16 %v806, %v805
    %v808 = vld [vmem:[%s4] sm:$0xff]
    %v809 = vld [vmem:[%s4 + $0x8] sm:$0xff]
    %v810 = vld [vmem:[%s4 + $0x10] sm:$0xff]
    %v811 = vld [vmem:[%s4 + $0x18] sm:$0xff]
    %v812 = vld [vmem:[%s4 + $0x20] sm:$0xff]
    %v813 = vld [vmem:[%s4 + $0x28] sm:$0xff]
    %v814 = vld [vmem:[%s4 + $0x30] sm:$0xff]
    %v815 = vld [vmem:[%s4 + $0x38] sm:$0xff]
    %v816 = vld [vmem:[%s4 + $0x40] sm:$0xff]
    %v817 = vld [vmem:[%s4 + $0x48] sm:$0xff]
    %v818 = vld [vmem:[%s4 + $0x50] sm:$0xff]
    %v819 = vld [vmem:[%s4 + $0x58] sm:$0xff]
    %v820 = vld [vmem:[%s4 + $0x60] sm:$0xff]
    %v821 = vld [vmem:[%s4 + $0x68] sm:$0xff]
    %v822 = vld [vmem:[%s4 + $0x70] sm:$0xff]
    %v823 = vld [vmem:[%s4 + $0x78] sm:$0xff]
    %v824 = vld [vmem:[#allocation2] sm:$0xff]
    %v825 = vld [vmem:[#allocation2 + $0x8] sm:$0xff]
    %v826 = vld [vmem:[#allocation2 + $0x10] sm:$0xff]
    %v827 = vld [vmem:[#allocation2 + $0x18] sm:$0xff]
    %v828 = vld [vmem:[#allocation2 + $0x20] sm:$0xff]
    %v829 = vld [vmem:[#allocation2 + $0x28] sm:$0xff]
    %v830 = vld [vmem:[#allocation2 + $0x30] sm:$0xff]
    %v831 = vld [vmem:[#allocation2 + $0x38] sm:$0xff]
    %v832 = vld [vmem:[%s6] sm:$0x3]
    %v834 = vlaneseq
    %v835 = vshrl.u32 %v834, 7
    %v836 = vsub.s32 0, %v835
    %v837 = vrot.slane %v832, %v836
    %v838 = vlaneseq
    %v839 = vshrl.u32 %v838, 7
    %v840 = vsub.s32 1, %v839
    %v841 = vrot.slane %v832, %v840
    %v860 = vunpack.c.l.b16 %v808
    %v861 = vunpack.c.h.b16 %v808
    %v862 = vunpack.c.l.b16 %v809
    %v863 = vunpack.c.h.b16 %v809
    %v864 = vunpack.c.l.b16 %v810
    %v865 = vunpack.c.h.b16 %v810
    %v866 = vunpack.c.l.b16 %v811
    %v867 = vunpack.c.h.b16 %v811
    %v868 = vunpack.c.l.b16 %v812
    %v869 = vunpack.c.h.b16 %v812
    %v870 = vunpack.c.l.b16 %v813
    %v871 = vunpack.c.h.b16 %v813
    %v872 = vunpack.c.l.b16 %v814
    %v873 = vunpack.c.h.b16 %v814
    %v874 = vunpack.c.l.b16 %v815
    %v875 = vunpack.c.h.b16 %v815
    %v876 = vunpack.c.l.b16 %v816
    %v877 = vunpack.c.h.b16 %v816
    %v878 = vunpack.c.l.b16 %v817
    %v879 = vunpack.c.h.b16 %v817
    %v880 = vunpack.c.l.b16 %v818
    %v881 = vunpack.c.h.b16 %v818
    %v882 = vunpack.c.l.b16 %v819
    %v883 = vunpack.c.h.b16 %v819
    %v884 = vunpack.c.l.b16 %v820
    %v885 = vunpack.c.h.b16 %v820
    %v886 = vunpack.c.l.b16 %v821
    %v887 = vunpack.c.h.b16 %v821
    %v888 = vunpack.c.l.b16 %v822
    %v889 = vunpack.c.h.b16 %v822
    %v890 = vunpack.c.l.b16 %v823
    %v891 = vunpack.c.h.b16 %v823
    %v892 = vpack.c.b16 %v862, %v860
    %v893 = vpack.c.b16 %v863, %v861
    %v894 = vpack.c.b16 %v866, %v864
    %v895 = vpack.c.b16 %v867, %v865
    %v896 = vpack.c.b16 %v870, %v868
    %v897 = vpack.c.b16 %v871, %v869
    %v898 = vpack.c.b16 %v874, %v872
    %v899 = vpack.c.b16 %v875, %v873
    %v900 = vpack.c.b16 %v878, %v876
    %v901 = vpack.c.b16 %v879, %v877
    %v902 = vpack.c.b16 %v882, %v880
    %v903 = vpack.c.b16 %v883, %v881
    %v904 = vpack.c.b16 %v886, %v884
    %v905 = vpack.c.b16 %v887, %v885
    %v906 = vpack.c.b16 %v890, %v888
    %v907 = vpack.c.b16 %v891, %v889
    %924 = vmatprep.subr.bf16.mxu0 %v893
    %925 = vmatpush1.bf16.msra.mxu0 %v892
    %926 = vmatprep.subr.bf16.mxu0 %v895
    %927 = vmatpush1.bf16.msra.mxu0 %v894
    %928 = vmatprep.subr.bf16.mxu0 %v897
    %929 = vmatpush1.bf16.msra.mxu0 %v896
    %930 = vmatprep.subr.bf16.mxu0 %v899
    %931 = vmatpush1.bf16.msra.mxu0 %v898
    %932 = vmatprep.subr.bf16.mxu0 %v901
    %933 = vmatpush1.bf16.msra.mxu0 %v900
    %934 = vmatprep.subr.bf16.mxu0 %v903
    %935 = vmatpush1.bf16.msra.mxu0 %v902
    %936 = vmatprep.subr.bf16.mxu0 %v905
    %937 = vmatpush1.bf16.msra.mxu0 %v904
    %938 = vmatprep.subr.bf16.mxu0 %v907
    %939 = vmatpush1.bf16.msra.mxu0 %v906
    %940 = vmatprep.subr.bf16.mxu0 0
    %941 = vmatpush1.bf16.msra.mxu0 0
    %942 = vmatprep.subr.bf16.mxu0 0
    %943 = vmatpush1.bf16.msra.mxu0 0
    %944 = vmatprep.subr.bf16.mxu0 0
    %945 = vmatpush1.bf16.msra.mxu0 0
    %946 = vmatprep.subr.bf16.mxu0 0
    %947 = vmatpush1.bf16.msra.mxu0 0
    %948 = vmatprep.subr.bf16.mxu0 0
    %949 = vmatpush1.bf16.msra.mxu0 0
    %950 = vmatprep.subr.bf16.mxu0 0
    %951 = vmatpush1.bf16.msra.mxu0 0
    %952 = vmatprep.subr.bf16.mxu0 0
    %953 = vmatpush1.bf16.msra.mxu0 0
    %954 = vmatprep.subr.bf16.mxu0 0
    %955 = vmatpush1.bf16.msra.mxu0 0
    %956 = vmatprep.mubr.bf16.mxu0 0
    %957 = vmatmul.mubr.bf16.gmra.mrb[0].mxu0 %v807
    %v958 = vpop.f32.mrb[0].mxu0
    %v959 = vadd.f32 %v837, %v958
    %v960 = vpop.f32.mrb[0].mxu0
    %v961 = vadd.f32 %v841, %v960
    %v962 = vpop.f32.mrb[0].mxu0
    %v963 = vadd.f32 %v837, %v962
    %v964 = vpop.f32.mrb[0].mxu0
    %v965 = vadd.f32 %v841, %v964
    %966 = vdwg.mxu0
    %v975 = vunpack.c.l.b16 %v824
    %v976 = vunpack.c.h.b16 %v824
    %v977 = vunpack.c.l.b16 %v825
    %v978 = vunpack.c.h.b16 %v825
    %v979 = vunpack.c.l.b16 %v826
    %v980 = vunpack.c.h.b16 %v826
    %v981 = vunpack.c.l.b16 %v827
    %v982 = vunpack.c.h.b16 %v827
    %v983 = vunpack.c.l.b16 %v828
    %v984 = vunpack.c.h.b16 %v828
    %v985 = vunpack.c.l.b16 %v829
    %v986 = vunpack.c.h.b16 %v829
    %v987 = vunpack.c.l.b16 %v830
    %v988 = vunpack.c.h.b16 %v830
    %v989 = vunpack.c.l.b16 %v831
    %v990 = vunpack.c.h.b16 %v831
    %v991 = vpack.c.b16 %v977, %v975
    %v992 = vpack.c.b16 %v978, %v976
    %v993 = vpack.c.b16 %v981, %v979
    %v994 = vpack.c.b16 %v982, %v980
    %v995 = vpack.c.b16 %v985, %v983
    %v996 = vpack.c.b16 %v986, %v984
    %v997 = vpack.c.b16 %v989, %v987
    %v998 = vpack.c.b16 %v990, %v988
    %1007 = vmatprep.subr.bf16.mxu0 %v992
    %1008 = vmatpush1.bf16.msra.mxu0 %v991
    %1009 = vmatprep.subr.bf16.mxu0 %v994
    %1010 = vmatpush1.bf16.msra.mxu0 %v993
    %1011 = vmatprep.subr.bf16.mxu0 %v996
    %1012 = vmatpush1.bf16.msra.mxu0 %v995
    %1013 = vmatprep.subr.bf16.mxu0 %v998
    %1014 = vmatpush1.bf16.msra.mxu0 %v997
    %1015 = vmatprep.subr.bf16.mxu0 0
    %1016 = vmatpush1.bf16.msra.mxu0 0
    %1017 = vmatprep.subr.bf16.mxu0 0
    %1018 = vmatpush1.bf16.msra.mxu0 0
    %1019 = vmatprep.subr.bf16.mxu0 0
    %1020 = vmatpush1.bf16.msra.mxu0 0
    %1021 = vmatprep.subr.bf16.mxu0 0
    %1022 = vmatpush1.bf16.msra.mxu0 0
    %1023 = vmatprep.subr.bf16.mxu0 0
    %1024 = vmatpush1.bf16.msra.mxu0 0
    %1025 = vmatprep.subr.bf16.mxu0 0
    %1026 = vmatpush1.bf16.msra.mxu0 0
    %1027 = vmatprep.subr.bf16.mxu0 0
    %1028 = vmatpush1.bf16.msra.mxu0 0
    %1029 = vmatprep.subr.bf16.mxu0 0
    %1030 = vmatpush1.bf16.msra.mxu0 0
    %1031 = vmatprep.subr.bf16.mxu0 0
    %1032 = vmatpush1.bf16.msra.mxu0 0
    %1033 = vmatprep.subr.bf16.mxu0 0
    %1034 = vmatpush1.bf16.msra.mxu0 0
    %1035 = vmatprep.subr.bf16.mxu0 0
    %1036 = vmatpush1.bf16.msra.mxu0 0
    %1037 = vmatprep.subr.bf16.mxu0 0
    %1038 = vmatpush1.bf16.msra.mxu0 0
    %1039 = vmatprep.mubr.bf16.mxu0 0
    %1040 = vmatmul.mubr.bf16.gmra.mrb[0].mxu0 %v181
    %v1041 = vpop.f32.mrb[0].mxu0
    %v1042 = vadd.f32 0.0, %v1041
    %v1043 = vpop.f32.mrb[0].mxu0
    %v1044 = vadd.f32 0.0, %v1043
    %v1045 = vpop.f32.mrb[0].mxu0
    %v1046 = vpop.f32.mrb[0].mxu0
    %1047 = vdwg.mxu0
    %v1048 = vadd.f32 %v959, %v1042
    %v1049 = vadd.f32 %v961, %v1044
    %v1050 = vtanh.pop %v1048
    %v1051 = vtanh.pop %v1049
    %v1052 = vmul.f32 %v1050, 0.5
    %v1053 = vadd.f32 %v1052, 0.5
    %v1054 = vmul.f32 %v1051, 0.5
    %v1055 = vadd.f32 %v1054, 0.5
    %v1056 = vmul.f32 %v1053, 0.0
    %v1057 = vmul.f32 %v1053, %v1051
    %1059 = vrot.lane.b32.xlu0 %v1057, 64
    %v1060 = vpop.permute.xlu0 %1059
    %v1062 = vadd.f32 %v1056, %v1060
    %v1063 = vtanh.pop %v1062
    %v1064 = vmul.f32 %v1055, %v1063
    %v1065 = vpack.c.bf16 %v1064, %v1064
    %1067 = vrot.lane.b32.xlu0 %v1065, 64
    %v1068 = vpop.permute.xlu0 %1067
    %v1070 = vsel %vm179, %v1068, 0
    %1072 = vmatprep.subr.bf16.mxu0 %v992
    %1073 = vmatpush1.bf16.msra.mxu0 %v991
    %1074 = vmatprep.subr.bf16.mxu0 %v994
    %1075 = vmatpush1.bf16.msra.mxu0 %v993
    %1076 = vmatprep.subr.bf16.mxu0 %v996
    %1077 = vmatpush1.bf16.msra.mxu0 %v995
    %1078 = vmatprep.subr.bf16.mxu0 %v998
    %1079 = vmatpush1.bf16.msra.mxu0 %v997
    %1080 = vmatprep.subr.bf16.mxu0 0
    %1081 = vmatpush1.bf16.msra.mxu0 0
    %1082 = vmatprep.subr.bf16.mxu0 0
    %1083 = vmatpush1.bf16.msra.mxu0 0
    %1084 = vmatprep.subr.bf16.mxu0 0
    %1085 = vmatpush1.bf16.msra.mxu0 0
    %1086 = vmatprep.subr.bf16.mxu0 0
    %1087 = vmatpush1.bf16.msra.mxu0 0
    %1088 = vmatprep.subr.bf16.mxu0 0
    %1089 = vmatpush1.bf16.msra.mxu0 0
    %1090 = vmatprep.subr.bf16.mxu0 0
    %1091 = vmatpush1.bf16.msra.mxu0 0
    %1092 = vmatprep.subr.bf16.mxu0 0
    %1093 = vmatpush1.bf16.msra.mxu0 0
    %1094 = vmatprep.subr.bf16.mxu0 0
    %1095 = vmatpush1.bf16.msra.mxu0 0
    %1096 = vmatprep.subr.bf16.mxu0 0
    %1097 = vmatpush1.bf16.msra.mxu0 0
    %1098 = vmatprep.subr.bf16.mxu0 0
    %1099 = vmatpush1.bf16.msra.mxu0 0
    %1100 = vmatprep.subr.bf16.mxu0 0
    %1101 = vmatpush1.bf16.msra.mxu0 0
    %1102 = vmatprep.subr.bf16.mxu0 0
    %1103 = vmatpush1.bf16.msra.mxu0 0
    %1104 = vmatprep.mubr.bf16.mxu0 0
    %1105 = vmatmul.mubr.bf16.gmra.mrb[0].mxu0 %v1070
    %v1106 = vpop.f32.mrb[0].mxu0
    %v1107 = vadd.f32 0.0, %v1106
    %v1108 = vpop.f32.mrb[0].mxu0
    %v1109 = vadd.f32 0.0, %v1108
    %v1110 = vpop.f32.mrb[0].mxu0
    %v1111 = vpop.f32.mrb[0].mxu0
    %1112 = vdwg.mxu0
    %v1115 = vrot.slane %v1107, 6
    %v1116 = vrot.slane %v1109, 6
    %v1119 = vadd.f32 %v959, %v1115
    %v1120 = vadd.f32 %v961, %v1116
    %v1121 = vtanh.pop %v1119
    %v1122 = vtanh.pop %v1120
    %v1123 = vmul.f32 %v1121, 0.5
    %v1124 = vadd.f32 %v1123, 0.5
    %v1125 = vmul.f32 %v1122, 0.5
    %v1126 = vadd.f32 %v1125, 0.5
    %v1128 = vrot.slane %v1062, 6
    %v1130 = vmul.f32 %v1124, %v1128
    %v1131 = vmul.f32 %v1124, %v1122
    %1133 = vrot.lane.b32.xlu0 %v1131, 64
    %v1134 = vpop.permute.xlu0 %1133
    %v1136 = vadd.f32 %v1130, %v1134
    %v1137 = vtanh.pop %v1136
    %v1138 = vmul.f32 %v1126, %v1137
    %v1139 = vpack.c.bf16 %v1138, %v1138
    %v1141 = vrot.slane %v1139, 1
    %1142 = vrot.lane.b32.xlu0 %v1141, 64
    %v1143 = vpop.permute.xlu0 %1142
    %v1145 = vsel %vm179, %v1143, 0
    %1147 = vmatprep.subr.bf16.mxu0 %v992
    %1148 = vmatpush1.bf16.msra.mxu0 %v991
    %1149 = vmatprep.subr.bf16.mxu0 %v994
    %1150 = vmatpush1.bf16.msra.mxu0 %v993
    %1151 = vmatprep.subr.bf16.mxu0 %v996
    %1152 = vmatpush1.bf16.msra.mxu0 %v995
    %1153 = vmatprep.subr.bf16.mxu0 %v998
    %1154 = vmatpush1.bf16.msra.mxu0 %v997
    %1155 = vmatprep.subr.bf16.mxu0 0
    %1156 = vmatpush1.bf16.msra.mxu0 0
    %1157 = vmatprep.subr.bf16.mxu0 0
    %1158 = vmatpush1.bf16.msra.mxu0 0
    %1159 = vmatprep.subr.bf16.mxu0 0
    %1160 = vmatpush1.bf16.msra.mxu0 0
    %1161 = vmatprep.subr.bf16.mxu0 0
    %1162 = vmatpush1.bf16.msra.mxu0 0
    %1163 = vmatprep.subr.bf16.mxu0 0
    %1164 = vmatpush1.bf16.msra.mxu0 0
    %1165 = vmatprep.subr.bf16.mxu0 0
    %1166 = vmatpush1.bf16.msra.mxu0 0
    %1167 = vmatprep.subr.bf16.mxu0 0
    %1168 = vmatpush1.bf16.msra.mxu0 0
    %1169 = vmatprep.subr.bf16.mxu0 0
    %1170 = vmatpush1.bf16.msra.mxu0 0
    %1171 = vmatprep.subr.bf16.mxu0 0
    %1172 = vmatpush1.bf16.msra.mxu0 0
    %1173 = vmatprep.subr.bf16.mxu0 0
    %1174 = vmatpush1.bf16.msra.mxu0 0
    %1175 = vmatprep.subr.bf16.mxu0 0
    %1176 = vmatpush1.bf16.msra.mxu0 0
    %1177 = vmatprep.subr.bf16.mxu0 0
    %1178 = vmatpush1.bf16.msra.mxu0 0
    %1179 = vmatprep.mubr.bf16.mxu0 0
    %1180 = vmatmul.mubr.bf16.gmra.mrb[0].mxu0 %v1145
    %v1181 = vpop.f32.mrb[0].mxu0
    %v1182 = vadd.f32 0.0, %v1181
    %v1183 = vpop.f32.mrb[0].mxu0
    %v1184 = vadd.f32 0.0, %v1183
    %v1185 = vpop.f32.mrb[0].mxu0
    %v1186 = vpop.f32.mrb[0].mxu0
    %1187 = vdwg.mxu0
    %v1190 = vrot.slane %v1182, 4
    %v1191 = vrot.slane %v1184, 4
    %v1194 = vadd.f32 %v959, %v1190
    %v1195 = vadd.f32 %v961, %v1191
    %v1196 = vtanh.pop %v1194
    %v1197 = vtanh.pop %v1195
    %v1198 = vmul.f32 %v1196, 0.5
    %v1199 = vadd.f32 %v1198, 0.5
    %v1200 = vmul.f32 %v1197, 0.5
    %v1201 = vadd.f32 %v1200, 0.5
    %v1203 = vrot.slane %v1136, 6
    %v1205 = vmul.f32 %v1199, %v1203
    %v1206 = vmul.f32 %v1199, %v1197
    %1208 = vrot.lane.b32.xlu0 %v1206, 64
    %v1209 = vpop.permute.xlu0 %1208
    %v1211 = vadd.f32 %v1205, %v1209
    %v1212 = vtanh.pop %v1211
    %v1213 = vmul.f32 %v1201, %v1212
    %v1214 = vpack.c.bf16 %v1213, %v1213
    %v1216 = vrot.slane %v1214, 2
    %1217 = vrot.lane.b32.xlu0 %v1216, 64
    %v1218 = vpop.permute.xlu0 %1217
    %v1220 = vsel %vm179, %v1218, 0
    %1222 = vmatprep.subr.bf16.mxu0 %v992
    %1223 = vmatpush1.bf16.msra.mxu0 %v991
    %1224 = vmatprep.subr.bf16.mxu0 %v994
    %1225 = vmatpush1.bf16.msra.mxu0 %v993
    %1226 = vmatprep.subr.bf16.mxu0 %v996
    %1227 = vmatpush1.bf16.msra.mxu0 %v995
    %1228 = vmatprep.subr.bf16.mxu0 %v998
    %1229 = vmatpush1.bf16.msra.mxu0 %v997
    %1230 = vmatprep.subr.bf16.mxu0 0
    %1231 = vmatpush1.bf16.msra.mxu0 0
    %1232 = vmatprep.subr.bf16.mxu0 0
    %1233 = vmatpush1.bf16.msra.mxu0 0
    %1234 = vmatprep.subr.bf16.mxu0 0
    %1235 = vmatpush1.bf16.msra.mxu0 0
    %1236 = vmatprep.subr.bf16.mxu0 0
    %1237 = vmatpush1.bf16.msra.mxu0 0
    %1238 = vmatprep.subr.bf16.mxu0 0
    %1239 = vmatpush1.bf16.msra.mxu0 0
    %1240 = vmatprep.subr.bf16.mxu0 0
    %1241 = vmatpush1.bf16.msra.mxu0 0
    %1242 = vmatprep.subr.bf16.mxu0 0
    %1243 = vmatpush1.bf16.msra.mxu0 0
    %1244 = vmatprep.subr.bf16.mxu0 0
    %1245 = vmatpush1.bf16.msra.mxu0 0
    %1246 = vmatprep.subr.bf16.mxu0 0
    %1247 = vmatpush1.bf16.msra.mxu0 0
    %1248 = vmatprep.subr.bf16.mxu0 0
    %1249 = vmatpush1.bf16.msra.mxu0 0
    %1250 = vmatprep.subr.bf16.mxu0 0
    %1251 = vmatpush1.bf16.msra.mxu0 0
    %1252 = vmatprep.subr.bf16.mxu0 0
    %1253 = vmatpush1.bf16.msra.mxu0 0
    %1254 = vmatprep.mubr.bf16.mxu0 0
    %1255 = vmatmul.mubr.bf16.gmra.mrb[0].mxu0 %v1220
    %v1256 = vpop.f32.mrb[0].mxu0
    %v1257 = vadd.f32 0.0, %v1256
    %v1258 = vpop.f32.mrb[0].mxu0
    %v1259 = vadd.f32 0.0, %v1258
    %v1260 = vpop.f32.mrb[0].mxu0
    %v1261 = vpop.f32.mrb[0].mxu0
    %1262 = vdwg.mxu0
    %v1265 = vrot.slane %v1257, 2
    %v1266 = vrot.slane %v1259, 2
    %v1269 = vadd.f32 %v959, %v1265
    %v1270 = vadd.f32 %v961, %v1266
    %v1271 = vtanh.pop %v1269
    %v1272 = vtanh.pop %v1270
    %v1273 = vmul.f32 %v1271, 0.5
    %v1274 = vadd.f32 %v1273, 0.5
    %v1275 = vmul.f32 %v1272, 0.5
    %v1276 = vadd.f32 %v1275, 0.5
    %v1278 = vrot.slane %v1211, 6
    %v1280 = vmul.f32 %v1274, %v1278
    %v1281 = vmul.f32 %v1274, %v1272
    %1283 = vrot.lane.b32.xlu0 %v1281, 64
    %v1284 = vpop.permute.xlu0 %1283
    %v1286 = vadd.f32 %v1280, %v1284
    %v1287 = vtanh.pop %v1286
    %v1288 = vmul.f32 %v1276, %v1287
    %v1289 = vpack.c.bf16 %v1288, %v1288
    %v1291 = vrot.slane %v1289, 3
    %1292 = vrot.lane.b32.xlu0 %v1291, 64
    %v1293 = vpop.permute.xlu0 %1292
    %v1295 = vsel %vm179, %v1293, 0
    %1297 = vmatprep.subr.bf16.mxu0 %v992
    %1298 = vmatpush1.bf16.msra.mxu0 %v991
    %1299 = vmatprep.subr.bf16.mxu0 %v994
    %1300 = vmatpush1.bf16.msra.mxu0 %v993
    %1301 = vmatprep.subr.bf16.mxu0 %v996
    %1302 = vmatpush1.bf16.msra.mxu0 %v995
    %1303 = vmatprep.subr.bf16.mxu0 %v998
    %1304 = vmatpush1.bf16.msra.mxu0 %v997
    %1305 = vmatprep.subr.bf16.mxu0 0
    %1306 = vmatpush1.bf16.msra.mxu0 0
    %1307 = vmatprep.subr.bf16.mxu0 0
    %1308 = vmatpush1.bf16.msra.mxu0 0
    %1309 = vmatprep.subr.bf16.mxu0 0
    %1310 = vmatpush1.bf16.msra.mxu0 0
    %1311 = vmatprep.subr.bf16.mxu0 0
    %1312 = vmatpush1.bf16.msra.mxu0 0
    %1313 = vmatprep.subr.bf16.mxu0 0
    %1314 = vmatpush1.bf16.msra.mxu0 0
    %1315 = vmatprep.subr.bf16.mxu0 0
    %1316 = vmatpush1.bf16.msra.mxu0 0
    %1317 = vmatprep.subr.bf16.mxu0 0
    %1318 = vmatpush1.bf16.msra.mxu0 0
    %1319 = vmatprep.subr.bf16.mxu0 0
    %1320 = vmatpush1.bf16.msra.mxu0 0
    %1321 = vmatprep.subr.bf16.mxu0 0
    %1322 = vmatpush1.bf16.msra.mxu0 0
    %1323 = vmatprep.subr.bf16.mxu0 0
    %1324 = vmatpush1.bf16.msra.mxu0 0
    %1325 = vmatprep.subr.bf16.mxu0 0
    %1326 = vmatpush1.bf16.msra.mxu0 0
    %1327 = vmatprep.subr.bf16.mxu0 0
    %1328 = vmatpush1.bf16.msra.mxu0 0
    %1329 = vmatprep.mubr.bf16.mxu0 0
    %1330 = vmatmul.mubr.bf16.gmra.mrb[0].mxu0 %v1295
    %v1331 = vpop.f32.mrb[0].mxu0
    %v1332 = vadd.f32 0.0, %v1331
    %v1333 = vpop.f32.mrb[0].mxu0
    %v1334 = vadd.f32 0.0, %v1333
    %v1335 = vpop.f32.mrb[0].mxu0
    %v1336 = vpop.f32.mrb[0].mxu0
    %1337 = vdwg.mxu0
    %v1338 = vadd.f32 %v963, %v1332
    %v1339 = vadd.f32 %v965, %v1334
    %v1340 = vtanh.pop %v1338
    %v1341 = vtanh.pop %v1339
    %v1342 = vmul.f32 %v1340, 0.5
    %v1343 = vadd.f32 %v1342, 0.5
    %v1344 = vmul.f32 %v1341, 0.5
    %v1345 = vadd.f32 %v1344, 0.5
    %v1347 = vrot.slane %v1286, 6
    %v1349 = vmul.f32 %v1343, %v1347
    %v1350 = vmul.f32 %v1343, %v1341
    %1352 = vrot.lane.b32.xlu0 %v1350, 64
    %v1353 = vpop.permute.xlu0 %1352
    %v1355 = vadd.f32 %v1349, %v1353
    %v1356 = vtanh.pop %v1355
    %v1357 = vmul.f32 %v1345, %v1356
    %v1358 = vpack.c.bf16 %v1357, %v1357
    %1360 = vrot.lane.b32.xlu0 %v1358, 64
    %v1361 = vpop.permute.xlu0 %1360
    %v1363 = vsel %vm179, %v1361, 0
    %1365 = vmatprep.subr.bf16.mxu0 %v992
    %1366 = vmatpush1.bf16.msra.mxu0 %v991
    %1367 = vmatprep.subr.bf16.mxu0 %v994
    %1368 = vmatpush1.bf16.msra.mxu0 %v993
    %1369 = vmatprep.subr.bf16.mxu0 %v996
    %1370 = vmatpush1.bf16.msra.mxu0 %v995
    %1371 = vmatprep.subr.bf16.mxu0 %v998
    %1372 = vmatpush1.bf16.msra.mxu0 %v997
    %1373 = vmatprep.subr.bf16.mxu0 0
    %1374 = vmatpush1.bf16.msra.mxu0 0
    %1375 = vmatprep.subr.bf16.mxu0 0
    %1376 = vmatpush1.bf16.msra.mxu0 0
    %1377 = vmatprep.subr.bf16.mxu0 0
    %1378 = vmatpush1.bf16.msra.mxu0 0
    %1379 = vmatprep.subr.bf16.mxu0 0
    %1380 = vmatpush1.bf16.msra.mxu0 0
    %1381 = vmatprep.subr.bf16.mxu0 0
    %1382 = vmatpush1.bf16.msra.mxu0 0
    %1383 = vmatprep.subr.bf16.mxu0 0
    %1384 = vmatpush1.bf16.msra.mxu0 0
    %1385 = vmatprep.subr.bf16.mxu0 0
    %1386 = vmatpush1.bf16.msra.mxu0 0
    %1387 = vmatprep.subr.bf16.mxu0 0
    %1388 = vmatpush1.bf16.msra.mxu0 0
    %1389 = vmatprep.subr.bf16.mxu0 0
    %1390 = vmatpush1.bf16.msra.mxu0 0
    %1391 = vmatprep.subr.bf16.mxu0 0
    %1392 = vmatpush1.bf16.msra.mxu0 0
    %1393 = vmatprep.subr.bf16.mxu0 0
    %1394 = vmatpush1.bf16.msra.mxu0 0
    %1395 = vmatprep.subr.bf16.mxu0 0
    %1396 = vmatpush1.bf16.msra.mxu0 0
    %1397 = vmatprep.mubr.bf16.mxu0 0
    %1398 = vmatmul.mubr.bf16.gmra.mrb[0].mxu0 %v1363
    %v1399 = vpop.f32.mrb[0].mxu0
    %v1400 = vadd.f32 0.0, %v1399
    %v1401 = vpop.f32.mrb[0].mxu0
    %v1402 = vadd.f32 0.0, %v1401
    %v1403 = vpop.f32.mrb[0].mxu0
    %v1404 = vpop.f32.mrb[0].mxu0
    %1405 = vdwg.mxu0
    %v1408 = vrot.slane %v1400, 6
    %v1409 = vrot.slane %v1402, 6
    %v1412 = vadd.f32 %v963, %v1408
    %v1413 = vadd.f32 %v965, %v1409
    %v1414 = vtanh.pop %v1412
    %v1415 = vtanh.pop %v1413
    %v1416 = vmul.f32 %v1414, 0.5
    %v1417 = vadd.f32 %v1416, 0.5
    %v1418 = vmul.f32 %v1415, 0.5
    %v1419 = vadd.f32 %v1418, 0.5
    %v1421 = vrot.slane %v1355, 6
    %v1423 = vmul.f32 %v1417, %v1421
    %v1424 = vmul.f32 %v1417, %v1415
    %1426 = vrot.lane.b32.xlu0 %v1424, 64
    %v1427 = vpop.permute.xlu0 %1426
    %v1429 = vadd.f32 %v1423, %v1427
    %v1430 = vtanh.pop %v1429
    %v1431 = vmul.f32 %v1419, %v1430
    %v1432 = vpack.c.bf16 %v1431, %v1431
    %v1434 = vrot.slane %v1432, 1
    %1435 = vrot.lane.b32.xlu0 %v1434, 64
    %v1436 = vpop.permute.xlu0 %1435
    %v1438 = vsel %vm179, %v1436, 0
    %1440 = vmatprep.subr.bf16.mxu0 %v992
    %1441 = vmatpush1.bf16.msra.mxu0 %v991
    %1442 = vmatprep.subr.bf16.mxu0 %v994
    %1443 = vmatpush1.bf16.msra.mxu0 %v993
    %1444 = vmatprep.subr.bf16.mxu0 %v996
    %1445 = vmatpush1.bf16.msra.mxu0 %v995
    %1446 = vmatprep.subr.bf16.mxu0 %v998
    %1447 = vmatpush1.bf16.msra.mxu0 %v997
    %1448 = vmatprep.subr.bf16.mxu0 0
    %1449 = vmatpush1.bf16.msra.mxu0 0
    %1450 = vmatprep.subr.bf16.mxu0 0
    %1451 = vmatpush1.bf16.msra.mxu0 0
    %1452 = vmatprep.subr.bf16.mxu0 0
    %1453 = vmatpush1.bf16.msra.mxu0 0
    %1454 = vmatprep.subr.bf16.mxu0 0
    %1455 = vmatpush1.bf16.msra.mxu0 0
    %1456 = vmatprep.subr.bf16.mxu0 0
    %1457 = vmatpush1.bf16.msra.mxu0 0
    %1458 = vmatprep.subr.bf16.mxu0 0
    %1459 = vmatpush1.bf16.msra.mxu0 0
    %1460 = vmatprep.subr.bf16.mxu0 0
    %1461 = vmatpush1.bf16.msra.mxu0 0
    %1462 = vmatprep.subr.bf16.mxu0 0
    %1463 = vmatpush1.bf16.msra.mxu0 0
    %1464 = vmatprep.subr.bf16.mxu0 0
    %1465 = vmatpush1.bf16.msra.mxu0 0
    %1466 = vmatprep.subr.bf16.mxu0 0
    %1467 = vmatpush1.bf16.msra.mxu0 0
    %1468 = vmatprep.subr.bf16.mxu0 0
    %1469 = vmatpush1.bf16.msra.mxu0 0
    %1470 = vmatprep.subr.bf16.mxu0 0
    %1471 = vmatpush1.bf16.msra.mxu0 0
    %1472 = vmatprep.mubr.bf16.mxu0 0
    %1473 = vmatmul.mubr.bf16.gmra.mrb[0].mxu0 %v1438
    %v1474 = vpop.f32.mrb[0].mxu0
    %v1475 = vadd.f32 0.0, %v1474
    %v1476 = vpop.f32.mrb[0].mxu0
    %v1477 = vadd.f32 0.0, %v1476
    %v1478 = vpop.f32.mrb[0].mxu0
    %v1479 = vpop.f32.mrb[0].mxu0
    %1480 = vdwg.mxu0
    %v1483 = vrot.slane %v1475, 4
    %v1484 = vrot.slane %v1477, 4
    %v1487 = vadd.f32 %v963, %v1483
    %v1488 = vadd.f32 %v965, %v1484
    %v1489 = vtanh.pop %v1487
    %v1490 = vtanh.pop %v1488
    %v1491 = vmul.f32 %v1489, 0.5
    %v1492 = vadd.f32 %v1491, 0.5
    %v1493 = vmul.f32 %v1490, 0.5
    %v1494 = vadd.f32 %v1493, 0.5
    %v1496 = vrot.slane %v1429, 6
    %v1498 = vmul.f32 %v1492, %v1496
    %v1499 = vmul.f32 %v1492, %v1490
    %1501 = vrot.lane.b32.xlu0 %v1499, 64
    %v1502 = vpop.permute.xlu0 %1501
    %v1504 = vadd.f32 %v1498, %v1502
    %v1505 = vtanh.pop %v1504
    %v1506 = vmul.f32 %v1494, %v1505
    %v1507 = vpack.c.bf16 %v1506, %v1506
    %v1509 = vrot.slane %v1507, 2
    %1510 = vrot.lane.b32.xlu0 %v1509, 64
    %v1511 = vpop.permute.xlu0 %1510
    %v1513 = vsel %vm179, %v1511, 0
    %1515 = vmatprep.subr.bf16.mxu0 %v992
    %1516 = vmatpush1.bf16.msra.mxu0 %v991
    %1517 = vmatprep.subr.bf16.mxu0 %v994
    %1518 = vmatpush1.bf16.msra.mxu0 %v993
    %1519 = vmatprep.subr.bf16.mxu0 %v996
    %1520 = vmatpush1.bf16.msra.mxu0 %v995
    %1521 = vmatprep.subr.bf16.mxu0 %v998
    %1522 = vmatpush1.bf16.msra.mxu0 %v997
    %1523 = vmatprep.subr.bf16.mxu0 0
    %1524 = vmatpush1.bf16.msra.mxu0 0
    %1525 = vmatprep.subr.bf16.mxu0 0
    %1526 = vmatpush1.bf16.msra.mxu0 0
    %1527 = vmatprep.subr.bf16.mxu0 0
    %1528 = vmatpush1.bf16.msra.mxu0 0
    %1529 = vmatprep.subr.bf16.mxu0 0
    %1530 = vmatpush1.bf16.msra.mxu0 0
    %1531 = vmatprep.subr.bf16.mxu0 0
    %1532 = vmatpush1.bf16.msra.mxu0 0
    %1533 = vmatprep.subr.bf16.mxu0 0
    %1534 = vmatpush1.bf16.msra.mxu0 0
    %1535 = vmatprep.subr.bf16.mxu0 0
    %1536 = vmatpush1.bf16.msra.mxu0 0
    %1537 = vmatprep.subr.bf16.mxu0 0
    %1538 = vmatpush1.bf16.msra.mxu0 0
    %1539 = vmatprep.subr.bf16.mxu0 0
    %1540 = vmatpush1.bf16.msra.mxu0 0
    %1541 = vmatprep.subr.bf16.mxu0 0
    %1542 = vmatpush1.bf16.msra.mxu0 0
    %1543 = vmatprep.subr.bf16.mxu0 0
    %1544 = vmatpush1.bf16.msra.mxu0 0
    %1545 = vmatprep.subr.bf16.mxu0 0
    %1546 = vmatpush1.bf16.msra.mxu0 0
    %1547 = vmatprep.mubr.bf16.mxu0 0
    %1548 = vmatmul.mubr.bf16.gmra.mrb[0].mxu0 %v1513
    %v1549 = vpop.f32.mrb[0].mxu0
    %v1550 = vadd.f32 0.0, %v1549
    %v1551 = vpop.f32.mrb[0].mxu0
    %v1552 = vadd.f32 0.0, %v1551
    %v1553 = vpop.f32.mrb[0].mxu0
    %v1554 = vpop.f32.mrb[0].mxu0
    %1555 = vdwg.mxu0
    %v1558 = vrot.slane %v1550, 2
    %v1559 = vrot.slane %v1552, 2
    %v1562 = vadd.f32 %v963, %v1558
    %v1563 = vadd.f32 %v965, %v1559
    %v1564 = vtanh.pop %v1562
    %v1565 = vtanh.pop %v1563
    %v1566 = vmul.f32 %v1564, 0.5
    %v1567 = vadd.f32 %v1566, 0.5
    %v1568 = vmul.f32 %v1565, 0.5
    %v1569 = vadd.f32 %v1568, 0.5
    %v1571 = vrot.slane %v1504, 6
    %v1573 = vmul.f32 %v1567, %v1571
    %v1574 = vmul.f32 %v1567, %v1565
    %1576 = vrot.lane.b32.xlu0 %v1574, 64
    %v1577 = vpop.permute.xlu0 %1576
    %v1579 = vadd.f32 %v1573, %v1577
    %v1580 = vtanh.pop %v1579
    %v1581 = vmul.f32 %v1569, %v1580
    %1583 = vrot.lane.b32.xlu0 %v1581, 64
    %v1584 = vpop.permute.xlu0 %1583
    %v1587 = vrot.slane %v1064, 2
    %1588 = vrot.lane.b32.xlu0 %v1587, 64
    %v1589 = vpop.permute.xlu0 %1588
    %vm1591 = vcmask 261120
    %v1592 = vsel %vm1591, %v1584, %v1589
    %v1593 = vld [vmem:[%s7] sm:$0xff]
    %v1594 = vld [vmem:[%s7 + $0x8] sm:$0xff]
    %v1595 = vld [vmem:[%s7 + $0x10] sm:$0xff]
    %v1596 = vld [vmem:[%s7 + $0x18] sm:$0xff]
    %v1597 = vld [vmem:[%s7 + $0x20] sm:$0xff]
    %v1598 = vld [vmem:[%s7 + $0x28] sm:$0xff]
    %v1599 = vld [vmem:[%s7 + $0x30] sm:$0xff]
    %v1600 = vld [vmem:[%s7 + $0x38] sm:$0xff]
    %v1601 = vld [vmem:[%s7 + $0x40] sm:$0xff]
    %v1602 = vld [vmem:[%s7 + $0x48] sm:$0xff]
    %v1603 = vld [vmem:[%s7 + $0x50] sm:$0xff]
    %v1604 = vld [vmem:[%s7 + $0x58] sm:$0xff]
    %v1605 = vld [vmem:[%s7 + $0x60] sm:$0xff]
    %v1606 = vld [vmem:[%s7 + $0x68] sm:$0xff]
    %v1607 = vld [vmem:[%s7 + $0x70] sm:$0xff]
    %v1608 = vld [vmem:[%s7 + $0x78] sm:$0xff]
    %v1609 = vld [vmem:[%s8] sm:$0x3]
    %v1611 = vlaneseq
    %v1612 = vshrl.u32 %v1611, 7
    %v1613 = vsub.s32 0, %v1612
    %v1614 = vrot.slane %v1609, %v1613
    %v1615 = vlaneseq
    %v1616 = vshrl.u32 %v1615, 7
    %v1617 = vsub.s32 1, %v1616
    %v1618 = vrot.slane %v1609, %v1617
    %v1622 = vrot.slane %v1592, 6
    %v1623 = vsel %vm179, %v1622, 0
    %1625 = vmatprep.subr.mxu0 %v1594
    %1626 = vmatpush1.msra.mxu0 %v1593
    %1627 = vmatprep.subr.mxu0 %v1596
    %1628 = vmatpush1.msra.mxu0 %v1595
    %1629 = vmatprep.subr.mxu0 %v1598
    %1630 = vmatpush1.msra.mxu0 %v1597
    %1631 = vmatprep.subr.mxu0 %v1600
    %1632 = vmatpush1.msra.mxu0 %v1599
    %1633 = vmatprep.subr.mxu0 %v1602
    %1634 = vmatpush1.msra.mxu0 %v1601
    %1635 = vmatprep.subr.mxu0 %v1604
    %1636 = vmatpush1.msra.mxu0 %v1603
    %1637 = vmatprep.subr.mxu0 %v1606
    %1638 = vmatpush1.msra.mxu0 %v1605
    %1639 = vmatprep.subr.mxu0 %v1608
    %1640 = vmatpush1.msra.mxu0 %v1607
    %1641 = vmatprep.subr.mxu0 0.0
    %1642 = vmatpush1.msra.mxu0 0.0
    %1643 = vmatprep.subr.mxu0 0.0
    %1644 = vmatpush1.msra.mxu0 0.0
    %1645 = vmatprep.subr.mxu0 0.0
    %1646 = vmatpush1.msra.mxu0 0.0
    %1647 = vmatprep.subr.mxu0 0.0
    %1648 = vmatpush1.msra.mxu0 0.0
    %1649 = vmatprep.subr.mxu0 0.0
    %1650 = vmatpush1.msra.mxu0 0.0
    %1651 = vmatprep.subr.mxu0 0.0
    %1652 = vmatpush1.msra.mxu0 0.0
    %1653 = vmatprep.subr.mxu0 0.0
    %1654 = vmatpush1.msra.mxu0 0.0
    %1655 = vmatprep.subr.mxu0 0.0
    %1656 = vmatpush1.msra.mxu0 0.0
    %1657 = vmatprep.subr.mxu0 0.0
    %1658 = vmatpush1.msra.mxu0 0.0
    %1659 = vmatprep.subr.mxu0 0.0
    %1660 = vmatpush1.msra.mxu0 0.0
    %1661 = vmatprep.subr.mxu0 0.0
    %1662 = vmatpush1.msra.mxu0 0.0
    %1663 = vmatprep.subr.mxu0 0.0
    %1664 = vmatpush1.msra.mxu0 0.0
    %1665 = vmatprep.subr.mxu0 0.0
    %1666 = vmatpush1.msra.mxu0 0.0
    %1667 = vmatprep.subr.mxu0 0.0
    %1668 = vmatpush1.msra.mxu0 0.0
    %1669 = vmatprep.subr.mxu0 0.0
    %1670 = vmatpush1.msra.mxu0 0.0
    %1671 = vmatprep.subr.mxu0 0.0
    %1672 = vmatpush1.msra.mxu0 0.0
    %1673 = vmatprep.subr.mxu0 0.0
    %1674 = vmatpush1.msra.mxu0 0.0
    %1675 = vmatprep.subr.mxu0 0.0
    %1676 = vmatpush1.msra.mxu0 0.0
    %1677 = vmatprep.subr.mxu0 0.0
    %1678 = vmatpush1.msra.mxu0 0.0
    %1679 = vmatprep.subr.mxu0 0.0
    %1680 = vmatpush1.msra.mxu0 0.0
    %1681 = vmatprep.subr.mxu0 0.0
    %1682 = vmatpush1.msra.mxu0 0.0
    %1683 = vmatprep.subr.mxu0 0.0
    %1684 = vmatpush1.msra.mxu0 0.0
    %1685 = vmatprep.subr.mxu0 0.0
    %1686 = vmatpush1.msra.mxu0 0.0
    %1687 = vmatprep.subr.mxu0 0.0
    %1688 = vmatpush1.msra.mxu0 0.0
    %1689 = vmatprep.mubr.f32.mxu0 0.0
    %1690 = vmatmul.mubr.f32.gmra.mrb[0].mxu0 %v1623
    %v1691 = vpop.f32.mrb[0].mxu0
    %v1692 = vadd.f32 %v1614, %v1691
    %v1693 = vpop.f32.mrb[0].mxu0
    %v1694 = vadd.f32 %v1618, %v1693
    %1695 = vdwg.mxu0
    %v1696 = vmax.f32 %v1692, 0.0
    %v1697 = vmax.f32 %v1694, 0.0
    %v1698 = vld [vmem:[%s9] sm:$0xff]
    %v1699 = vld [vmem:[%s9 + $0x8] sm:$0xff]
    %v1700 = vld [vmem:[%s9 + $0x10] sm:$0xff]
    %v1701 = vld [vmem:[%s9 + $0x18] sm:$0xff]
    %v1702 = vld [vmem:[%s9 + $0x20] sm:$0xff]
    %v1703 = vld [vmem:[%s9 + $0x28] sm:$0xff]
    %v1704 = vld [vmem:[%s9 + $0x30] sm:$0xff]
    %v1705 = vld [vmem:[%s9 + $0x38] sm:$0xff]
    %v1706 = vld [vmem:[%s9 + $0x40] sm:$0xff]
    %v1707 = vld [vmem:[%s9 + $0x48] sm:$0xff]
    %v1708 = vld [vmem:[%s9 + $0x50] sm:$0xff]
    %v1709 = vld [vmem:[%s9 + $0x58] sm:$0xff]
    %v1710 = vld [vmem:[%s9 + $0x60] sm:$0xff]
    %v1711 = vld [vmem:[%s9 + $0x68] sm:$0xff]
    %v1712 = vld [vmem:[%s9 + $0x70] sm:$0xff]
    %v1713 = vld [vmem:[%s9 + $0x78] sm:$0xff]
    %v1714 = vld [vmem:[%s9 + $0x80] sm:$0xff]
    %v1715 = vld [vmem:[%s9 + $0x88] sm:$0xff]
    %v1716 = vld [vmem:[%s9 + $0x90] sm:$0xff]
    %v1717 = vld [vmem:[%s9 + $0x98] sm:$0xff]
    %v1718 = vld [vmem:[%s9 + $0xa0] sm:$0xff]
    %v1719 = vld [vmem:[%s9 + $0xa8] sm:$0xff]
    %v1720 = vld [vmem:[%s9 + $0xb0] sm:$0xff]
    %v1721 = vld [vmem:[%s9 + $0xb8] sm:$0xff]
    %v1722 = vld [vmem:[%s9 + $0xc0] sm:$0xff]
    %v1723 = vld [vmem:[%s9 + $0xc8] sm:$0xff]
    %v1724 = vld [vmem:[%s9 + $0xd0] sm:$0xff]
    %v1725 = vld [vmem:[%s9 + $0xd8] sm:$0xff]
    %v1726 = vld [vmem:[%s9 + $0xe0] sm:$0xff]
    %v1727 = vld [vmem:[%s9 + $0xe8] sm:$0xff]
    %v1728 = vld [vmem:[%s9 + $0xf0] sm:$0xff]
    %v1729 = vld [vmem:[%s9 + $0xf8] sm:$0xff]
    %v1730 = vld [vmem:[%s10] sm:$0x1]
    %v1732 = vlaneseq
    %v1733 = vshrl.u32 %v1732, 7
    %v1734 = vsub.s32 0, %v1733
    %v1735 = vrot.slane %v1730, %v1734
    %1737 = vmatprep.subr.mxu0 0.0
    %1738 = vmatpush1.msra.mxu0 %v1698
    %1739 = vmatprep.subr.mxu0 0.0
    %1740 = vmatpush1.msra.mxu0 %v1699
    %1741 = vmatprep.subr.mxu0 0.0
    %1742 = vmatpush1.msra.mxu0 %v1700
    %1743 = vmatprep.subr.mxu0 0.0
    %1744 = vmatpush1.msra.mxu0 %v1701
    %1745 = vmatprep.subr.mxu0 0.0
    %1746 = vmatpush1.msra.mxu0 %v1702
    %1747 = vmatprep.subr.mxu0 0.0
    %1748 = vmatpush1.msra.mxu0 %v1703
    %1749 = vmatprep.subr.mxu0 0.0
    %1750 = vmatpush1.msra.mxu0 %v1704
    %1751 = vmatprep.subr.mxu0 0.0
    %1752 = vmatpush1.msra.mxu0 %v1705
    %1753 = vmatprep.subr.mxu0 0.0
    %1754 = vmatpush1.msra.mxu0 %v1706
    %1755 = vmatprep.subr.mxu0 0.0
    %1756 = vmatpush1.msra.mxu0 %v1707
    %1757 = vmatprep.subr.mxu0 0.0
    %1758 = vmatpush1.msra.mxu0 %v1708
    %1759 = vmatprep.subr.mxu0 0.0
    %1760 = vmatpush1.msra.mxu0 %v1709
    %1761 = vmatprep.subr.mxu0 0.0
    %1762 = vmatpush1.msra.mxu0 %v1710
    %1763 = vmatprep.subr.mxu0 0.0
    %1764 = vmatpush1.msra.mxu0 %v1711
    %1765 = vmatprep.subr.mxu0 0.0
    %1766 = vmatpush1.msra.mxu0 %v1712
    %1767 = vmatprep.subr.mxu0 0.0
    %1768 = vmatpush1.msra.mxu0 %v1713
    %1769 = vmatprep.subr.mxu0 0.0
    %1770 = vmatpush1.msra.mxu0 %v1714
    %1771 = vmatprep.subr.mxu0 0.0
    %1772 = vmatpush1.msra.mxu0 %v1715
    %1773 = vmatprep.subr.mxu0 0.0
    %1774 = vmatpush1.msra.mxu0 %v1716
    %1775 = vmatprep.subr.mxu0 0.0
    %1776 = vmatpush1.msra.mxu0 %v1717
    %1777 = vmatprep.subr.mxu0 0.0
    %1778 = vmatpush1.msra.mxu0 %v1718
    %1779 = vmatprep.subr.mxu0 0.0
    %1780 = vmatpush1.msra.mxu0 %v1719
    %1781 = vmatprep.subr.mxu0 0.0
    %1782 = vmatpush1.msra.mxu0 %v1720
    %1783 = vmatprep.subr.mxu0 0.0
    %1784 = vmatpush1.msra.mxu0 %v1721
    %1785 = vmatprep.subr.mxu0 0.0
    %1786 = vmatpush1.msra.mxu0 %v1722
    %1787 = vmatprep.subr.mxu0 0.0
    %1788 = vmatpush1.msra.mxu0 %v1723
    %1789 = vmatprep.subr.mxu0 0.0
    %1790 = vmatpush1.msra.mxu0 %v1724
    %1791 = vmatprep.subr.mxu0 0.0
    %1792 = vmatpush1.msra.mxu0 %v1725
    %1793 = vmatprep.subr.mxu0 0.0
    %1794 = vmatpush1.msra.mxu0 %v1726
    %1795 = vmatprep.subr.mxu0 0.0
    %1796 = vmatpush1.msra.mxu0 %v1727
    %1797 = vmatprep.subr.mxu0 0.0
    %1798 = vmatpush1.msra.mxu0 %v1728
    %1799 = vmatprep.subr.mxu0 0.0
    %1800 = vmatpush1.msra.mxu0 %v1729
    %1801 = vmatprep.mubr.f32.mxu0 %v1697
    %1802 = vmatmul.mubr.f32.gmra.mrb[0].mxu0 %v1696
    %v1803 = vpop.f32.mrb[0].mxu0
    %v1804 = vadd.f32 %v1735, %v1803
    %v1805 = vpop.f32.mrb[0].mxu0
    %1806 = vdwg.mxu0
    %vm1807 = vcmp.gt.f32.partialorder %v1804, 20.0
    %v1808 = vmin.f32 %v1804, 20.0
    %v1809 = vmul.f32 %v1808, 1.442695
    %v1810 = vpow.pop %v1809
    %v1811 = vadd.f32 %v1810, 1.0
    %v1812 = vlog2.pop %v1811
    %v1813 = vmul.f32 %v1812, 0.6931472
    %v1814 = vmul.f32 -0.5, %v1810
    %v1815 = vadd.f32 %v1814, 1.0
    %v1816 = vmul.f32 %v1815, %v1810
    %v1817 = vand.u32 2147483647, %v1810
    %vm1818 = vcmp.lt.f32.partialorder %v1817, 0.0004427343
    %v1819 = vsel %vm1818, %v1816, %v1813
    %v1820 = vsel %vm1807, %v1804, %v1819
    %v1821 = vlaneseq
    %v1822 = vand.u32 %v1821, 127
    %vm1823 = vcmp.ge.s32.totalorder %v1822, 1
    %v1824 = vsel %vm1823, %v1820, %v1804
    %vm1825 = vcmask 9216
    %1826 = vst.msk [vmem:[%s11] sm:$0x3] %vm1825, %v1824
    // Predicated region
    $region50: #{_lambda_.1} parent=1 // pred_check
      _
    $region51: #{_lambda_.1} parent=1 // pred_check_branch
      %1828 = sbr.rel (0) target = $region53
    $region52: #{_lambda_.1} parent=1 // pred_region
      _
    $region53: #{_lambda_.1} parent=1 // pred_fallthru
      _
    // Predicated region
    $region54: #{_lambda_.1} parent=1 // pred_check
      _
    $region55: #{_lambda_.1} parent=1 // pred_check_branch
      %1830 = sbr.rel (0) target = $region57
    $region56: #{_lambda_.1} parent=1 // pred_region
      _
    $region57: #{_lambda_.1} parent=1 // pred_fallthru
      _
    %1831 = vsyncpa [#allocation3], 1

</llo_original>
